<compile_context>
chip_gen: v7x
topology: tpu7x:2x2x1
jax: 0.10.0
libtpu: 0.0.40
codegen_flags: <defaults>
</compile_context>

<pallas_src>
import math

import jax
import jax.numpy as jnp
from jax import lax
from jax.experimental import pallas as pl
from jax.experimental.pallas import tpu as pltpu

LN_EPS = 1e-5  # torch.nn.LayerNorm default


# ----------------------------------------------------------------------------
# Kernel
# ----------------------------------------------------------------------------
def _patch_merge_kernel(x_ref, g_ref, b_ref, w_ref, o_ref):
    """Fused patch-merge + LayerNorm(patch_dim) + Linear(patch_dim->out_dim).

    x_ref: (tile_s, p, Wm, p*C)   tile_s strips of p image rows, original layout
    g_ref: (p, 1, p*C)            LayerNorm gamma, split per row-chunk
    b_ref: (p, 1, p*C)            LayerNorm beta,  split per row-chunk
    w_ref: (p, p*C, out_dim)      reduction weight, split per row-chunk
    o_ref: (tile_s*Wm, out_dim)   merged-patch rows, row-major in (strip, wm)
    """
    tile_s, p, wm, pc = x_ref.shape
    rows = tile_s * wm
    patch_dim = p * pc
    out_dim = o_ref.shape[-1]

    x = x_ref[...]
    # Each merged patch's patch_dim vector is the concat over p1 of the chunks
    # x[s, p1, wm, :].  Work chunk-wise so no transpose is needed.
    # (For Wm a multiple of 8 this reshape is layout-preserving; otherwise it
    #  is a VMEM-local relayout only — never an HBM round trip.)
    chunks = [
        x[:, p1].astype(jnp.float32).reshape(rows, pc) for p1 in range(p)
    ]

    # LayerNorm statistics over the full patch_dim (sum over chunks + lanes).
    s1 = chunks[0].sum(axis=-1, keepdims=True)
    s2 = (chunks[0] * chunks[0]).sum(axis=-1, keepdims=True)
    for c in chunks[1:]:
        s1 = s1 + c.sum(axis=-1, keepdims=True)
        s2 = s2 + (c * c).sum(axis=-1, keepdims=True)
    inv_pd = 1.0 / float(patch_dim)
    mean = s1 * inv_pd
    var = s2 * inv_pd - mean * mean
    inv = lax.rsqrt(var + LN_EPS)

    # Linear reduction by linearity: sum_p1 (y_chunk_p1 @ W_chunk_p1).
    acc = jnp.zeros((rows, out_dim), jnp.float32)
    for p1 in range(p):
        g = g_ref[p1].astype(jnp.float32)        # (1, pc)
        b = b_ref[p1].astype(jnp.float32)        # (1, pc)
        y = (chunks[p1] - mean) * inv * g + b    # (rows, pc), f32 LN math
        w_c = w_ref[p1]                          # (pc, out_dim)
        acc = acc + jnp.dot(
            y.astype(w_c.dtype), w_c, preferred_element_type=jnp.float32
        )
    o_ref[...] = acc.astype(o_ref.dtype)


# ----------------------------------------------------------------------------
# Tiling helpers
# ----------------------------------------------------------------------------
def _legal_tile_s(tile_s, n_strips, wm):
    """Make tile_s legal: flattened output rows (tile_s*Wm) must tile sublanes
    (multiple of 8) unless the block covers the whole array."""
    tile_s = max(1, int(tile_s))
    if tile_s >= n_strips:
        return n_strips
    if (tile_s * wm) % 8 != 0:
        step = 8 // math.gcd(wm, 8)
        tile_s = ((tile_s + step - 1) // step) * step
    return min(tile_s, n_strips)


def _auto_tile_s(n_strips, wm, strip_in_bytes, strip_out_bytes,
                 target_rows, vmem_block_budget):
    by_rows = max(1, target_rows // max(wm, 1))
    per_strip = 2 * (strip_in_bytes + strip_out_bytes)   # double-buffered in+out
    by_vmem = max(1, vmem_block_budget // max(per_strip, 1))
    return _legal_tile_s(min(n_strips, by_rows, by_vmem), n_strips, wm)


# ----------------------------------------------------------------------------
# Wrapper
# ----------------------------------------------------------------------------
def patch_merging_pallas(x, gamma, beta, w, *, patch_size, tile_s=None,
                         target_rows=1024, vmem_block_budget=6 << 20,
                         out_dtype=None):
    """x: (B, N, C) channels-last tokens.  Returns (B, N // patch_size**2, out_dim)."""
    B, N, C = x.shape
    p = int(patch_size)
    H = int(round(math.sqrt(N)))
    assert H * H == N, "num_patches must form a square grid"
    assert H % p == 0, "grid side must be divisible by patch_size"
    Hm = Wm = H // p
    pC = p * C
    patch_dim = C * p * p
    out_dim = w.shape[-1]
    assert w.shape[0] == patch_dim
    assert gamma.shape[-1] == patch_dim and beta.shape[-1] == patch_dim
    out_dtype = x.dtype if out_dtype is None else jnp.dtype(out_dtype)

    # ---- free (bitcast) reshapes only; no HBM transpose before the kernel ----
    S = B * Hm                                    # strips of p image rows
    x_r = x.reshape(S, p, Wm, pC)                 # b (h w) c -> (b h) p1 w (p2 c)
    g3 = gamma.reshape(p, 1, pC)
    b3 = beta.reshape(p, 1, pC)
    w3 = w.reshape(p, pC, out_dim)

    itemsize = x.dtype.itemsize
    out_itemsize = jnp.dtype(out_dtype).itemsize
    strip_in_bytes = p * Wm * pC * itemsize
    strip_out_bytes = Wm * out_dim * out_itemsize

    if tile_s is None:
        tile_s = _auto_tile_s(S, Wm, strip_in_bytes, strip_out_bytes,
                              target_rows, vmem_block_budget)
    else:
        tile_s = _legal_tile_s(tile_s, S, Wm)

    n_steps = pl.cdiv(S, tile_s)
    S_pad = n_steps * tile_s
    if S_pad != S:
        # Padding rows flow through LN/matmul harmlessly and are sliced off.
        x_r = jnp.pad(x_r, ((0, S_pad - S), (0, 0), (0, 0), (0, 0)))
    grid = (n_steps,)
    rows_per_step = tile_s * Wm

    # Explicit VMEM budget with headroom (fits v7x 64 MiB, raises v5e's 16 MiB
    # scoped default; the auto-tiler keeps the working set at a few MiB).
    param_bytes = (g3.size * g3.dtype.itemsize + b3.size * b3.dtype.itemsize
                   + w3.size * w3.dtype.itemsize)
    block_bytes = tile_s * (strip_in_bytes + strip_out_bytes)
    f32_scratch = 3 * tile_s * p * Wm * pC * 4   # f32 intermediates in-kernel
    need = 2 * block_bytes + 2 * param_bytes + f32_scratch
    vmem_limit_bytes = int(max(32 << 20, min(need + (8 << 20), 64 << 20)))

    x_spec = pl.BlockSpec((tile_s, p, Wm, pC), lambda i: (i, 0, 0, 0))
    out_spec = pl.BlockSpec((rows_per_step, out_dim), lambda i: (i, 0))

    def _const_spec(shape, single_buffer):
        imap = lambda i, _s=shape: (0,) * len(_s)
        if single_buffer:
            # Grid-invariant operand: single-buffer it (no need to double-buffer).
            return pl.BlockSpec(shape, imap, pipeline_mode=pl.Buffered(1))
        return pl.BlockSpec(shape, imap)

    def _run(single_buffer_params):
        in_specs = [
            x_spec,
            _const_spec((p, 1, pC), single_buffer_params),
            _const_spec((p, 1, pC), single_buffer_params),
            _const_spec((p, pC, out_dim), single_buffer_params),
        ]
        return pl.pallas_call(
            _patch_merge_kernel,
            out_shape=jax.ShapeDtypeStruct((S_pad * Wm, out_dim), out_dtype),
            grid_spec=pltpu.PrefetchScalarGridSpec(
                num_scalar_prefetch=0,
                grid=grid,
                in_specs=in_specs,
                out_specs=out_spec,
            ),
            compiler_params=pltpu.CompilerParams(
                dimension_semantics=("parallel",),   # row blocks are independent
                vmem_limit_bytes=vmem_limit_bytes,
            ),
        )(x_r, g3, b3, w3)

    try:
        out2d = _run(single_buffer_params=True)
    except Exception:
        # pipeline_mode=pl.Buffered(1) unsupported in this build: params are
        # tiny, so fall back to default double-buffering of the constants.
        out2d = _run(single_buffer_params=False)

    if S_pad != S:
        out2d = out2d[: S * Wm]
    return out2d.reshape(B, Hm * Wm, out_dim)


# ----------------------------------------------------------------------------
# Pure-JAX reference mirroring the PyTorch forward
# ----------------------------------------------------------------------------
def patch_merging_ref(x, gamma, beta, w, *, patch_size):
    B, N, C = x.shape
    H = int(round(math.sqrt(N)))
    p = patch_size
    patch_dim = C * p * p
    xm = x.astype(jnp.float32).reshape(B, H, H, C)
    xm = xm.reshape(B, H // p, p, H // p, p, C).transpose(0, 1, 3, 2, 4, 5)
    xm = xm.reshape(B, (H // p) ** 2, patch_dim)
    mean = jnp.mean(xm, axis=-1, keepdims=True)
    var = jnp.mean((xm - mean) ** 2, axis=-1, keepdims=True)
    y = (xm - mean) * lax.rsqrt(var + LN_EPS) * gamma.astype(jnp.float32) \
        + beta.astype(jnp.float32)
    return jnp.dot(y, w.astype(jnp.float32))


# ----------------------------------------------------------------------------
# Demo / self-test
# ----------------------------------------------------------------------------
if __name__ == "__main__":
    # Module config: num_patches = 64 (8x8 grid), patch_size = 2, dim = 8, out_dim = 32
    B = 2
    num_patches = 64
    patch_size = 2
    dim = 8
    out_dim = 32
    patch_dim = dim * patch_size ** 2  # 32

    key = jax.random.PRNGKey(0)
    kx, kw, kg, kb = jax.random.split(key, 4)

    x = jax.random.normal(kx, (B, num_patches, dim), dtype=jnp.float32)

    # Deterministic synthetic parameters (no checkpoint load).
    # nn.Linear(patch_dim, out_dim, bias=False) weight kept pre-transposed as
    # (patch_dim, out_dim) for y @ W^T.
    bound = 1.0 / math.sqrt(patch_dim)
    w = jax.random.uniform(kw, (patch_dim, out_dim), dtype=jnp.float32,
                           minval=-bound, maxval=bound)
    gamma = 1.0 + 0.1 * jax.random.normal(kg, (patch_dim,), dtype=jnp.float32)
    beta = 0.05 * jax.random.normal(kb, (patch_dim,), dtype=jnp.float32)

    ref = patch_merging_ref(x, gamma, beta, w, patch_size=patch_size)

    # 1) f32, auto-picked large tile (single grid step at this toy size).
    out = patch_merging_pallas(x, gamma, beta, w, patch_size=patch_size)
    out = jax.block_until_ready(out)
    assert out.shape == (B, num_patches // patch_size ** 2, out_dim)
    err = float(jnp.max(jnp.abs(out - ref)))
    assert jnp.allclose(out, ref, atol=2e-4, rtol=2e-4), f"f32 max err {err}"

    # 2) Explicit small tile_s: exercises cdiv grid + padding (non-divisible rows).
    out_t = patch_merging_pallas(x, gamma, beta, w, patch_size=patch_size, tile_s=3)
    out_t = jax.block_until_ready(out_t)
    err_t = float(jnp.max(jnp.abs(out_t - ref)))
    assert jnp.allclose(out_t, ref, atol=2e-4, rtol=2e-4), f"tiled max err {err_t}"

    # 3) bf16 activations + weights (memory-bound win); LN math stays f32 in-kernel.
    xb = x.astype(jnp.bfloat16)
    wb = w.astype(jnp.bfloat16)
    ref_b = patch_merging_ref(xb.astype(jnp.float32), gamma, beta,
                              wb.astype(jnp.float32), patch_size=patch_size)
    out_b = patch_merging_pallas(xb, gamma, beta, wb, patch_size=patch_size)
    out_b = jax.block_until_ready(out_b)
    err_b = float(jnp.max(jnp.abs(out_b.astype(jnp.float32) - ref_b)))
    assert jnp.allclose(out_b.astype(jnp.float32), ref_b,
                        atol=8e-2, rtol=5e-2), f"bf16 max err {err_b}"

    print("KERNEL_OK")
</pallas_src>

<mosaic_0001>
module attributes {stable_mosaic.version = 11 : i64} {
  func.func @_patch_merge_kernel(%arg0: i32, %arg1: memref<8x2x4x16xf32, #tpu.memory_space<vmem>>, %arg2: memref<2x1x16xf32, #tpu.memory_space<vmem>>, %arg3: memref<2x1x16xf32, #tpu.memory_space<vmem>>, %arg4: memref<2x16x32xf32, #tpu.memory_space<vmem>>, %arg5: memref<32x32xf32, #tpu.memory_space<vmem>>) attributes {dimension_semantics = [#tpu.dimension_semantics<parallel>], iteration_bounds = array<i64: 1>, scalar_prefetch = 0 : i64, scratch_operands = 0 : i64, tpu.core_type = #tpu.core_type<tc>, window_params = [{transform_indices = @transform_0, window_bounds = array<i64: 8, 2, 4, 16>}, {pipeline_mode = #tpu.pipeline_mode<synchronous>, transform_indices = @transform_1, window_bounds = array<i64: 2, 1, 16>}, {pipeline_mode = #tpu.pipeline_mode<synchronous>, transform_indices = @transform_2, window_bounds = array<i64: 2, 1, 16>}, {pipeline_mode = #tpu.pipeline_mode<synchronous>, transform_indices = @transform_3, window_bounds = array<i64: 2, 16, 32>}, {transform_indices = @transform_4, window_bounds = array<i64: 32, 32>}]} {
    %c0 = arith.constant 0 : index
    %c0_0 = arith.constant 0 : index
    %c0_1 = arith.constant 0 : index
    %c0_2 = arith.constant 0 : index
    %0 = vector.load %arg1[%c0, %c0_0, %c0_1, %c0_2] : memref<8x2x4x16xf32, #tpu.memory_space<vmem>>, vector<8x2x4x16xf32>
    %1 = vector.extract_strided_slice %0 {offsets = [0, 0, 0, 0], sizes = [8, 1, 4, 16], strides = [1, 1, 1, 1]} : vector<8x2x4x16xf32> to vector<8x1x4x16xf32>
    %2 = vector.shape_cast %1 : vector<8x1x4x16xf32> to vector<8x4x16xf32>
    %3 = vector.shape_cast %2 : vector<8x4x16xf32> to vector<32x16xf32>
    %4 = vector.extract_strided_slice %0 {offsets = [0, 1, 0, 0], sizes = [8, 1, 4, 16], strides = [1, 1, 1, 1]} : vector<8x2x4x16xf32> to vector<8x1x4x16xf32>
    %5 = vector.shape_cast %4 : vector<8x1x4x16xf32> to vector<8x4x16xf32>
    %6 = vector.shape_cast %5 : vector<8x4x16xf32> to vector<32x16xf32>
    %cst = arith.constant dense<0.000000e+00> : vector<32xf32>
    %7 = vector.multi_reduction <add>, %3, %cst [1] : vector<32x16xf32> to vector<32xf32>
    %8 = vector.shape_cast %7 : vector<32xf32> to vector<32x1xf32>
    %9 = arith.mulf %3, %3 : vector<32x16xf32>
    %cst_3 = arith.constant dense<0.000000e+00> : vector<32xf32>
    %10 = vector.multi_reduction <add>, %9, %cst_3 [1] : vector<32x16xf32> to vector<32xf32>
    %11 = vector.shape_cast %10 : vector<32xf32> to vector<32x1xf32>
    %cst_4 = arith.constant dense<0.000000e+00> : vector<32xf32>
    %12 = vector.multi_reduction <add>, %6, %cst_4 [1] : vector<32x16xf32> to vector<32xf32>
    %13 = vector.shape_cast %12 : vector<32xf32> to vector<32x1xf32>
    %14 = arith.addf %8, %13 : vector<32x1xf32>
    %15 = arith.mulf %6, %6 : vector<32x16xf32>
    %cst_5 = arith.constant dense<0.000000e+00> : vector<32xf32>
    %16 = vector.multi_reduction <add>, %15, %cst_5 [1] : vector<32x16xf32> to vector<32xf32>
    %17 = vector.shape_cast %16 : vector<32xf32> to vector<32x1xf32>
    %18 = arith.addf %11, %17 : vector<32x1xf32>
    %cst_6 = arith.constant 3.125000e-02 : f32
    %19 = vector.broadcast %cst_6 : f32 to vector<32x1xf32>
    %20 = arith.mulf %14, %19 : vector<32x1xf32>
    %cst_7 = arith.constant 3.125000e-02 : f32
    %21 = vector.broadcast %cst_7 : f32 to vector<32x1xf32>
    %22 = arith.mulf %18, %21 : vector<32x1xf32>
    %23 = arith.mulf %20, %20 : vector<32x1xf32>
    %24 = arith.subf %22, %23 : vector<32x1xf32>
    %cst_8 = arith.constant 9.99999974E-6 : f32
    %25 = vector.broadcast %cst_8 : f32 to vector<32x1xf32>
    %26 = arith.addf %24, %25 : vector<32x1xf32>
    %27 = math.rsqrt %26 : vector<32x1xf32>
    %cst_9 = arith.constant 0.000000e+00 : f32
    %28 = vector.broadcast %cst_9 : f32 to vector<32x32xf32>
    %c0_10 = arith.constant 0 : index
    %c0_11 = arith.constant 0 : index
    %c0_12 = arith.constant 0 : index
    %29 = vector.load %arg2[%c0_10, %c0_11, %c0_12] : memref<2x1x16xf32, #tpu.memory_space<vmem>>, vector<1x1x16xf32>
    %30 = vector.shape_cast %29 : vector<1x1x16xf32> to vector<1x16xf32>
    %c0_13 = arith.constant 0 : index
    %c0_14 = arith.constant 0 : index
    %c0_15 = arith.constant 0 : index
    %31 = vector.load %arg3[%c0_13, %c0_14, %c0_15] : memref<2x1x16xf32, #tpu.memory_space<vmem>>, vector<1x1x16xf32>
    %32 = vector.shape_cast %31 : vector<1x1x16xf32> to vector<1x16xf32>
    %33 = vector.broadcast %20 : vector<32x1xf32> to vector<32x16xf32>
    %34 = arith.subf %3, %33 : vector<32x16xf32>
    %35 = vector.broadcast %27 : vector<32x1xf32> to vector<32x16xf32>
    %36 = arith.mulf %34, %35 : vector<32x16xf32>
    %37 = vector.broadcast %30 : vector<1x16xf32> to vector<32x16xf32>
    %38 = arith.mulf %36, %37 : vector<32x16xf32>
    %39 = vector.broadcast %32 : vector<1x16xf32> to vector<32x16xf32>
    %40 = arith.addf %38, %39 : vector<32x16xf32>
    %c0_16 = arith.constant 0 : index
    %c0_17 = arith.constant 0 : index
    %c0_18 = arith.constant 0 : index
    %41 = vector.load %arg4[%c0_16, %c0_17, %c0_18] : memref<2x16x32xf32, #tpu.memory_space<vmem>>, vector<1x16x32xf32>
    %42 = vector.shape_cast %41 : vector<1x16x32xf32> to vector<16x32xf32>
    %cst_19 = arith.constant dense<0.000000e+00> : vector<32x32xf32>
    %43 = tpu.matmul %40, %42, %cst_19 {dimension_numbers = #tpu.dot_dimension_numbers<[1], [0], [0], [1], [0, 0, 1, 1], [], []>} : vector<32x16xf32>, vector<16x32xf32>, vector<32x32xf32> -> vector<32x32xf32>
    %44 = arith.addf %28, %43 : vector<32x32xf32>
    %c1 = arith.constant 1 : index
    %c0_20 = arith.constant 0 : index
    %c0_21 = arith.constant 0 : index
    %45 = vector.load %arg2[%c1, %c0_20, %c0_21] : memref<2x1x16xf32, #tpu.memory_space<vmem>>, vector<1x1x16xf32>
    %46 = vector.shape_cast %45 : vector<1x1x16xf32> to vector<1x16xf32>
    %c1_22 = arith.constant 1 : index
    %c0_23 = arith.constant 0 : index
    %c0_24 = arith.constant 0 : index
    %47 = vector.load %arg3[%c1_22, %c0_23, %c0_24] : memref<2x1x16xf32, #tpu.memory_space<vmem>>, vector<1x1x16xf32>
    %48 = vector.shape_cast %47 : vector<1x1x16xf32> to vector<1x16xf32>
    %49 = vector.broadcast %20 : vector<32x1xf32> to vector<32x16xf32>
    %50 = arith.subf %6, %49 : vector<32x16xf32>
    %51 = vector.broadcast %27 : vector<32x1xf32> to vector<32x16xf32>
    %52 = arith.mulf %50, %51 : vector<32x16xf32>
    %53 = vector.broadcast %46 : vector<1x16xf32> to vector<32x16xf32>
    %54 = arith.mulf %52, %53 : vector<32x16xf32>
    %55 = vector.broadcast %48 : vector<1x16xf32> to vector<32x16xf32>
    %56 = arith.addf %54, %55 : vector<32x16xf32>
    %c1_25 = arith.constant 1 : index
    %c0_26 = arith.constant 0 : index
    %c0_27 = arith.constant 0 : index
    %57 = vector.load %arg4[%c1_25, %c0_26, %c0_27] : memref<2x16x32xf32, #tpu.memory_space<vmem>>, vector<1x16x32xf32>
    %58 = vector.shape_cast %57 : vector<1x16x32xf32> to vector<16x32xf32>
    %cst_28 = arith.constant dense<0.000000e+00> : vector<32x32xf32>
    %59 = tpu.matmul %56, %58, %cst_28 {dimension_numbers = #tpu.dot_dimension_numbers<[1], [0], [0], [1], [0, 0, 1, 1], [], []>} : vector<32x16xf32>, vector<16x32xf32>, vector<32x32xf32> -> vector<32x32xf32>
    %60 = arith.addf %44, %59 : vector<32x32xf32>
    %c0_29 = arith.constant 0 : index
    %c0_30 = arith.constant 0 : index
    %61 = vector.load %arg5[%c0_29, %c0_30] : memref<32x32xf32, #tpu.memory_space<vmem>>, vector<32x32xf32>
    tpu.vector_store %arg5[%c0_29, %c0_30], %60 {strides = array<i32>} : memref<32x32xf32, #tpu.memory_space<vmem>>, vector<32x32xf32>,
    return
  }
  func.func @transform_0(%arg0: i32) -> (i32, i32, i32, i32) {
    %c0_i32 = arith.constant 0 : i32
    %c0_i32_0 = arith.constant 0 : i32
    %c0_i32_1 = arith.constant 0 : i32
    %c0_i32_2 = arith.constant 0 : i32
    return %arg0, %c0_i32, %c0_i32_0, %c0_i32_1 : i32, i32, i32, i32
  }
  func.func @transform_1(%arg0: i32) -> (i32, i32, i32) {
    %c0_i32 = arith.constant 0 : i32
    %c0_i32_0 = arith.constant 0 : i32
    %c0_i32_1 = arith.constant 0 : i32
    %c0_i32_2 = arith.constant 0 : i32
    return %c0_i32, %c0_i32_0, %c0_i32_1 : i32, i32, i32
  }
  func.func @transform_2(%arg0: i32) -> (i32, i32, i32) {
    %c0_i32 = arith.constant 0 : i32
    %c0_i32_0 = arith.constant 0 : i32
    %c0_i32_1 = arith.constant 0 : i32
    %c0_i32_2 = arith.constant 0 : i32
    return %c0_i32, %c0_i32_0, %c0_i32_1 : i32, i32, i32
  }
  func.func @transform_3(%arg0: i32) -> (i32, i32, i32) {
    %c0_i32 = arith.constant 0 : i32
    %c0_i32_0 = arith.constant 0 : i32
    %c0_i32_1 = arith.constant 0 : i32
    %c0_i32_2 = arith.constant 0 : i32
    return %c0_i32, %c0_i32_0, %c0_i32_1 : i32, i32, i32
  }
  func.func @transform_4(%arg0: i32) -> (i32, i32) {
    %c0_i32 = arith.constant 0 : i32
    %c0_i32_0 = arith.constant 0 : i32
    return %arg0, %c0_i32 : i32, i32
  }
}

module attributes {stable_mosaic.version = 11 : i64} {
  func.func @_patch_merge_kernel(%arg0: i32, %arg1: memref<8x2x4x16xf32, #tpu.memory_space<vmem>>, %arg2: memref<2x1x16xf32, #tpu.memory_space<vmem>>, %arg3: memref<2x1x16xf32, #tpu.memory_space<vmem>>, %arg4: memref<2x16x32xf32, #tpu.memory_space<vmem>>, %arg5: memref<32x32xf32, #tpu.memory_space<vmem>>) attributes {dimension_semantics = [#tpu.dimension_semantics<parallel>], iteration_bounds = array<i64: 1>, scalar_prefetch = 0 : i64, scratch_operands = 0 : i64, tpu.core_type = #tpu.core_type<tc>, window_params = [{transform_indices = @transform_0, window_bounds = array<i64: 8, 2, 4, 16>}, {pipeline_mode = #tpu.pipeline_mode<synchronous>, transform_indices = @transform_1, window_bounds = array<i64: 2, 1, 16>}, {pipeline_mode = #tpu.pipeline_mode<synchronous>, transform_indices = @transform_2, window_bounds = array<i64: 2, 1, 16>}, {pipeline_mode = #tpu.pipeline_mode<synchronous>, transform_indices = @transform_3, window_bounds = array<i64: 2, 16, 32>}, {transform_indices = @transform_4, window_bounds = array<i64: 32, 32>}]} {
    %c0 = arith.constant 0 : index
    %c0_0 = arith.constant 0 : index
    %c0_1 = arith.constant 0 : index
    %c0_2 = arith.constant 0 : index
    %0 = vector.load %arg1[%c0, %c0_0, %c0_1, %c0_2] : memref<8x2x4x16xf32, #tpu.memory_space<vmem>>, vector<8x2x4x16xf32>
    %1 = vector.extract_strided_slice %0 {offsets = [0, 0, 0, 0], sizes = [8, 1, 4, 16], strides = [1, 1, 1, 1]} : vector<8x2x4x16xf32> to vector<8x1x4x16xf32>
    %2 = vector.shape_cast %1 : vector<8x1x4x16xf32> to vector<8x4x16xf32>
    %3 = vector.shape_cast %2 : vector<8x4x16xf32> to vector<32x16xf32>
    %4 = vector.extract_strided_slice %0 {offsets = [0, 1, 0, 0], sizes = [8, 1, 4, 16], strides = [1, 1, 1, 1]} : vector<8x2x4x16xf32> to vector<8x1x4x16xf32>
    %5 = vector.shape_cast %4 : vector<8x1x4x16xf32> to vector<8x4x16xf32>
    %6 = vector.shape_cast %5 : vector<8x4x16xf32> to vector<32x16xf32>
    %cst = arith.constant dense<0.000000e+00> : vector<32xf32>
    %7 = vector.multi_reduction <add>, %3, %cst [1] : vector<32x16xf32> to vector<32xf32>
    %8 = vector.shape_cast %7 : vector<32xf32> to vector<32x1xf32>
    %9 = arith.mulf %3, %3 : vector<32x16xf32>
    %cst_3 = arith.constant dense<0.000000e+00> : vector<32xf32>
    %10 = vector.multi_reduction <add>, %9, %cst_3 [1] : vector<32x16xf32> to vector<32xf32>
    %11 = vector.shape_cast %10 : vector<32xf32> to vector<32x1xf32>
    %cst_4 = arith.constant dense<0.000000e+00> : vector<32xf32>
    %12 = vector.multi_reduction <add>, %6, %cst_4 [1] : vector<32x16xf32> to vector<32xf32>
    %13 = vector.shape_cast %12 : vector<32xf32> to vector<32x1xf32>
    %14 = arith.addf %8, %13 : vector<32x1xf32>
    %15 = arith.mulf %6, %6 : vector<32x16xf32>
    %cst_5 = arith.constant dense<0.000000e+00> : vector<32xf32>
    %16 = vector.multi_reduction <add>, %15, %cst_5 [1] : vector<32x16xf32> to vector<32xf32>
    %17 = vector.shape_cast %16 : vector<32xf32> to vector<32x1xf32>
    %18 = arith.addf %11, %17 : vector<32x1xf32>
    %cst_6 = arith.constant 3.125000e-02 : f32
    %19 = vector.broadcast %cst_6 : f32 to vector<32x1xf32>
    %20 = arith.mulf %14, %19 : vector<32x1xf32>
    %cst_7 = arith.constant 3.125000e-02 : f32
    %21 = vector.broadcast %cst_7 : f32 to vector<32x1xf32>
    %22 = arith.mulf %18, %21 : vector<32x1xf32>
    %23 = arith.mulf %20, %20 : vector<32x1xf32>
    %24 = arith.subf %22, %23 : vector<32x1xf32>
    %cst_8 = arith.constant 9.99999974E-6 : f32
    %25 = vector.broadcast %cst_8 : f32 to vector<32x1xf32>
    %26 = arith.addf %24, %25 : vector<32x1xf32>
    %27 = math.rsqrt %26 : vector<32x1xf32>
    %cst_9 = arith.constant 0.000000e+00 : f32
    %28 = vector.broadcast %cst_9 : f32 to vector<32x32xf32>
    %c0_10 = arith.constant 0 : index
    %c0_11 = arith.constant 0 : index
    %c0_12 = arith.constant 0 : index
    %29 = vector.load %arg2[%c0_10, %c0_11, %c0_12] : memref<2x1x16xf32, #tpu.memory_space<vmem>>, vector<1x1x16xf32>
    %30 = vector.shape_cast %29 : vector<1x1x16xf32> to vector<1x16xf32>
    %c0_13 = arith.constant 0 : index
    %c0_14 = arith.constant 0 : index
    %c0_15 = arith.constant 0 : index
    %31 = vector.load %arg3[%c0_13, %c0_14, %c0_15] : memref<2x1x16xf32, #tpu.memory_space<vmem>>, vector<1x1x16xf32>
    %32 = vector.shape_cast %31 : vector<1x1x16xf32> to vector<1x16xf32>
    %33 = vector.broadcast %20 : vector<32x1xf32> to vector<32x16xf32>
    %34 = arith.subf %3, %33 : vector<32x16xf32>
    %35 = vector.broadcast %27 : vector<32x1xf32> to vector<32x16xf32>
    %36 = arith.mulf %34, %35 : vector<32x16xf32>
    %37 = vector.broadcast %30 : vector<1x16xf32> to vector<32x16xf32>
    %38 = arith.mulf %36, %37 : vector<32x16xf32>
    %39 = vector.broadcast %32 : vector<1x16xf32> to vector<32x16xf32>
    %40 = arith.addf %38, %39 : vector<32x16xf32>
    %c0_16 = arith.constant 0 : index
    %c0_17 = arith.constant 0 : index
    %c0_18 = arith.constant 0 : index
    %41 = vector.load %arg4[%c0_16, %c0_17, %c0_18] : memref<2x16x32xf32, #tpu.memory_space<vmem>>, vector<1x16x32xf32>
    %42 = vector.shape_cast %41 : vector<1x16x32xf32> to vector<16x32xf32>
    %cst_19 = arith.constant dense<0.000000e+00> : vector<32x32xf32>
    %43 = tpu.matmul %40, %42, %cst_19 {dimension_numbers = #tpu.dot_dimension_numbers<[1], [0], [0], [1], [0, 0, 1, 1], [], []>} : vector<32x16xf32>, vector<16x32xf32>, vector<32x32xf32> -> vector<32x32xf32>
    %44 = arith.addf %28, %43 : vector<32x32xf32>
    %c1 = arith.constant 1 : index
    %c0_20 = arith.constant 0 : index
    %c0_21 = arith.constant 0 : index
    %45 = vector.load %arg2[%c1, %c0_20, %c0_21] : memref<2x1x16xf32, #tpu.memory_space<vmem>>, vector<1x1x16xf32>
    %46 = vector.shape_cast %45 : vector<1x1x16xf32> to vector<1x16xf32>
    %c1_22 = arith.constant 1 : index
    %c0_23 = arith.constant 0 : index
    %c0_24 = arith.constant 0 : index
    %47 = vector.load %arg3[%c1_22, %c0_23, %c0_24] : memref<2x1x16xf32, #tpu.memory_space<vmem>>, vector<1x1x16xf32>
    %48 = vector.shape_cast %47 : vector<1x1x16xf32> to vector<1x16xf32>
    %49 = vector.broadcast %20 : vector<32x1xf32> to vector<32x16xf32>
    %50 = arith.subf %6, %49 : vector<32x16xf32>
    %51 = vector.broadcast %27 : vector<32x1xf32> to vector<32x16xf32>
    %52 = arith.mulf %50, %51 : vector<32x16xf32>
    %53 = vector.broadcast %46 : vector<1x16xf32> to vector<32x16xf32>
    %54 = arith.mulf %52, %53 : vector<32x16xf32>
    %55 = vector.broadcast %48 : vector<1x16xf32> to vector<32x16xf32>
    %56 = arith.addf %54, %55 : vector<32x16xf32>
    %c1_25 = arith.constant 1 : index
    %c0_26 = arith.constant 0 : index
    %c0_27 = arith.constant 0 : index
    %57 = vector.load %arg4[%c1_25, %c0_26, %c0_27] : memref<2x16x32xf32, #tpu.memory_space<vmem>>, vector<1x16x32xf32>
    %58 = vector.shape_cast %57 : vector<1x16x32xf32> to vector<16x32xf32>
    %cst_28 = arith.constant dense<0.000000e+00> : vector<32x32xf32>
    %59 = tpu.matmul %56, %58, %cst_28 {dimension_numbers = #tpu.dot_dimension_numbers<[1], [0], [0], [1], [0, 0, 1, 1], [], []>} : vector<32x16xf32>, vector<16x32xf32>, vector<32x32xf32> -> vector<32x32xf32>
    %60 = arith.addf %44, %59 : vector<32x32xf32>
    %c0_29 = arith.constant 0 : index
    %c0_30 = arith.constant 0 : index
    %61 = vector.load %arg5[%c0_29, %c0_30] : memref<32x32xf32, #tpu.memory_space<vmem>>, vector<32x32xf32>
    tpu.vector_store %arg5[%c0_29, %c0_30], %60 {strides = array<i32>} : memref<32x32xf32, #tpu.memory_space<vmem>>, vector<32x32xf32>,
    return
  }
  func.func @transform_0(%arg0: i32) -> (i32, i32, i32, i32) {
    %c0_i32 = arith.constant 0 : i32
    %c0_i32_0 = arith.constant 0 : i32
    %c0_i32_1 = arith.constant 0 : i32
    %c0_i32_2 = arith.constant 0 : i32
    return %arg0, %c0_i32, %c0_i32_0, %c0_i32_1 : i32, i32, i32, i32
  }
  func.func @transform_1(%arg0: i32) -> (i32, i32, i32) {
    %c0_i32 = arith.constant 0 : i32
    %c0_i32_0 = arith.constant 0 : i32
    %c0_i32_1 = arith.constant 0 : i32
    %c0_i32_2 = arith.constant 0 : i32
    return %c0_i32, %c0_i32_0, %c0_i32_1 : i32, i32, i32
  }
  func.func @transform_2(%arg0: i32) -> (i32, i32, i32) {
    %c0_i32 = arith.constant 0 : i32
    %c0_i32_0 = arith.constant 0 : i32
    %c0_i32_1 = arith.constant 0 : i32
    %c0_i32_2 = arith.constant 0 : i32
    return %c0_i32, %c0_i32_0, %c0_i32_1 : i32, i32, i32
  }
  func.func @transform_3(%arg0: i32) -> (i32, i32, i32) {
    %c0_i32 = arith.constant 0 : i32
    %c0_i32_0 = arith.constant 0 : i32
    %c0_i32_1 = arith.constant 0 : i32
    %c0_i32_2 = arith.constant 0 : i32
    return %c0_i32, %c0_i32_0, %c0_i32_1 : i32, i32, i32
  }
  func.func @transform_4(%arg0: i32) -> (i32, i32) {
    %c0_i32 = arith.constant 0 : i32
    %c0_i32_0 = arith.constant 0 : i32
    return %arg0, %c0_i32 : i32, i32
  }
}

</mosaic_0001>

<llo_original>
// kernel: tpu_custom_call.1
$region0: #{tpu_custom_call.1}
  #allocation0 [shape = 'u32[]', space=smem, size = 0x4, offset = 0x4, fixed_abs, tag = 'smem constant byte address 0x4 - core index']
  #allocation1 [shape = 'u32[144,128]{1,0:T(1,128)}', space=vmem, size = 0x12000, scoped, tag = 'internal scratch']
  %s0 = inlined_call_operand.hbm [shape: f32[8,2,4,16], index: 0, kind: input, shape index: {}]
  %s1 = inlined_call_operand.vmem [shape: f32[2,1,16], index: 1, kind: input, shape index: {}]
  %s2 = inlined_call_operand.vmem [shape: f32[2,1,16], index: 2, kind: input, shape index: {}]
  %s3 = inlined_call_operand.hbm [shape: f32[2,16,32], index: 3, kind: input, shape index: {}]
  %s4 = inlined_call_operand.hbm [shape: f32[32,32], index: 4, kind: output, shape index: {}]
  %s5 = sld [smem:[#allocation0]]
  $region34: #{tpu_custom_call.1} parent=0
    _
  %s7 = ssub.s32 1, %s5
  %s8 = scalar_select 0, %s7, %s5
  $region1: #{tpu_custom_call.1} parent=0
    #allocation2 [shape = 'u8[32768]{0}', space=vmem, size = 0x8000, scoped, tag = 'input window, operand 0, single buffered']
    #allocation3 [shape = 's32[1]{0}', space=sflag, size = 0x4, scoped, tag = 'scoped memory for tpu_custom_call.1']
    #allocation4 [shape = 's32[1]{0}', space=sflag, size = 0x4, scoped, tag = 'scoped memory for tpu_custom_call.1']
    #allocation5 [shape = 'u8[16384]{0}', space=vmem, size = 0x4000, scoped, tag = 'input window, operand 3, single buffered']
    #allocation6 [shape = 's32[1]{0}', space=sflag, size = 0x4, scoped, tag = 'scoped memory for tpu_custom_call.1']
    #allocation7 [shape = 'u8[16384]{0}', space=vmem, size = 0x4000, scoped, tag = 'output window, operand 0, single buffered']
    %9 = vsyncpa [#allocation3], 0
    %10 = vsyncpa [#allocation6], 0
    %11 = vsyncpa [#allocation4], 0
    // Predicated region
    $region2: #{tpu_custom_call.1} parent=1 // pred_check
      _
    $region3: #{tpu_custom_call.1} parent=1 // pred_check_branch
      %13 = sbr.rel (0) target = $region5
    $region4: #{tpu_custom_call.1} parent=1 // pred_region
      %s15 = ssub.s32 1024, 1024
      %16 = vsyncadd [#allocation3], %s15
      %s17 = sshll.u32 [#allocation2], 4
      %s18 = int_to_ptr.vmem [resolvable:$true] %s17
      %23 = dma.hbm_to_vmem [thread:$0]  %s0, 1024, %s18, [#allocation3], 64, 64, 4
    $region5: #{tpu_custom_call.1} parent=1 // pred_fallthru
      _
    // Predicated region
    $region6: #{tpu_custom_call.1} parent=1 // pred_check
      _
    $region7: #{tpu_custom_call.1} parent=1 // pred_check_branch
      %25 = sbr.rel (0) target = $region9
    $region8: #{tpu_custom_call.1} parent=1 // pred_region
      _
    $region9: #{tpu_custom_call.1} parent=1 // pred_fallthru
      _
    // Predicated region
    $region10: #{tpu_custom_call.1} parent=1 // pred_check
      _
    $region11: #{tpu_custom_call.1} parent=1 // pred_check_branch
      %27 = sbr.rel (0) target = $region13
    $region12: #{tpu_custom_call.1} parent=1 // pred_region
      _
    $region13: #{tpu_custom_call.1} parent=1 // pred_fallthru
      _
    // Predicated region
    $region14: #{tpu_custom_call.1} parent=1 // pred_check
      _
    $region15: #{tpu_custom_call.1} parent=1 // pred_check_branch
      %29 = sbr.rel (0) target = $region17
    $region16: #{tpu_custom_call.1} parent=1 // pred_region
      %s31 = ssub.s32 512, 512
      %32 = vsyncadd [#allocation6], %s31
      %s33 = sshll.u32 [#allocation5], 4
      %s34 = int_to_ptr.vmem [resolvable:$true] %s33
      %39 = dma.hbm_to_vmem [thread:$0]  %s3, 512, %s34, [#allocation6], 128, 128, 8
    $region17: #{tpu_custom_call.1} parent=1 // pred_fallthru
      _
    // Predicated region
    $region18: #{tpu_custom_call.1} parent=1 // pred_check
      _
    $region19: #{tpu_custom_call.1} parent=1 // pred_check_branch
      %41 = sbr.rel (0) target = $region21
    $region20: #{tpu_custom_call.1} parent=1 // pred_region
      %42 = dma.done [#allocation3], 1024
    $region21: #{tpu_custom_call.1} parent=1 // pred_fallthru
      _
    // Predicated region
    $region22: #{tpu_custom_call.1} parent=1 // pred_check
      _
    $region23: #{tpu_custom_call.1} parent=1 // pred_check_branch
      %44 = sbr.rel (0) target = $region25
    $region24: #{tpu_custom_call.1} parent=1 // pred_region
      %45 = dma.done [#allocation6], 512
    $region25: #{tpu_custom_call.1} parent=1 // pred_fallthru
      _
    %v46 = vld [vmem:[#allocation2] sm:$0xf]
    %v47 = vld [vmem:[#allocation2 + $0x4] sm:$0xf]
    %v48 = vld [vmem:[#allocation2 + $0x8] sm:$0xf]
    %v49 = vld [vmem:[#allocation2 + $0xc] sm:$0xf]
    %v50 = vld [vmem:[#allocation2 + $0x10] sm:$0xf]
    %v51 = vld [vmem:[#allocation2 + $0x14] sm:$0xf]
    %v52 = vld [vmem:[#allocation2 + $0x18] sm:$0xf]
    %v53 = vld [vmem:[#allocation2 + $0x1c] sm:$0xf]
    %v54 = vld [vmem:[#allocation2 + $0x20] sm:$0xf]
    %v55 = vld [vmem:[#allocation2 + $0x24] sm:$0xf]
    %v56 = vld [vmem:[#allocation2 + $0x28] sm:$0xf]
    %v57 = vld [vmem:[#allocation2 + $0x2c] sm:$0xf]
    %v58 = vld [vmem:[#allocation2 + $0x30] sm:$0xf]
    %v59 = vld [vmem:[#allocation2 + $0x34] sm:$0xf]
    %v60 = vld [vmem:[#allocation2 + $0x38] sm:$0xf]
    %v61 = vld [vmem:[#allocation2 + $0x3c] sm:$0xf]
    %v70 = vcombine.low %v46, %v48
    %v71 = vcombine.low %v50, %v52
    %v72 = vcombine.low %v54, %v56
    %v73 = vcombine.low %v58, %v60
    %vm78 = vcmask 130048
    %v79 = vsel %vm78, %v70, 0.0
    %80 = vadd.xlane.f32.xlu0 %v79
    %v81 = vpop.xlane.xlu0 %80
    %v82 = vsel %vm78, %v71, 0.0
    %83 = vadd.xlane.f32.xlu0 %v82
    %v84 = vpop.xlane.xlu0 %83
    %v85 = vsel %vm78, %v72, 0.0
    %86 = vadd.xlane.f32.xlu0 %v85
    %v87 = vpop.xlane.xlu0 %86
    %v88 = vsel %vm78, %v73, 0.0
    %89 = vadd.xlane.f32.xlu0 %v88
    %v90 = vpop.xlane.xlu0 %89
    %v91 = vmul.f32 %v46, %v46
    %v92 = vmul.f32 %v48, %v48
    %v93 = vmul.f32 %v50, %v50
    %v94 = vmul.f32 %v52, %v52
    %v95 = vmul.f32 %v54, %v54
    %v96 = vmul.f32 %v56, %v56
    %v97 = vmul.f32 %v58, %v58
    %v98 = vmul.f32 %v60, %v60
    %v107 = vcombine.low %v91, %v92
    %v108 = vcombine.low %v93, %v94
    %v109 = vcombine.low %v95, %v96
    %v110 = vcombine.low %v97, %v98
    %v115 = vsel %vm78, %v107, 0.0
    %116 = vadd.xlane.f32.xlu0 %v115
    %v117 = vpop.xlane.xlu0 %116
    %v118 = vsel %vm78, %v108, 0.0
    %119 = vadd.xlane.f32.xlu0 %v118
    %v120 = vpop.xlane.xlu0 %119
    %v121 = vsel %vm78, %v109, 0.0
    %122 = vadd.xlane.f32.xlu0 %v121
    %v123 = vpop.xlane.xlu0 %122
    %v124 = vsel %vm78, %v110, 0.0
    %125 = vadd.xlane.f32.xlu0 %v124
    %v126 = vpop.xlane.xlu0 %125
    %v135 = vcombine.low %v47, %v49
    %v136 = vcombine.low %v51, %v53
    %v137 = vcombine.low %v55, %v57
    %v138 = vcombine.low %v59, %v61
    %v143 = vsel %vm78, %v135, 0.0
    %144 = vadd.xlane.f32.xlu0 %v143
    %v145 = vpop.xlane.xlu0 %144
    %v146 = vsel %vm78, %v136, 0.0
    %147 = vadd.xlane.f32.xlu0 %v146
    %v148 = vpop.xlane.xlu0 %147
    %v149 = vsel %vm78, %v137, 0.0
    %150 = vadd.xlane.f32.xlu0 %v149
    %v151 = vpop.xlane.xlu0 %150
    %v152 = vsel %vm78, %v138, 0.0
    %153 = vadd.xlane.f32.xlu0 %v152
    %v154 = vpop.xlane.xlu0 %153
    %v155 = vadd.f32 %v81, %v145
    %v156 = vadd.f32 %v84, %v148
    %v157 = vadd.f32 %v87, %v151
    %v158 = vadd.f32 %v90, %v154
    %v159 = vmul.f32 %v47, %v47
    %v160 = vmul.f32 %v49, %v49
    %v161 = vmul.f32 %v51, %v51
    %v162 = vmul.f32 %v53, %v53
    %v163 = vmul.f32 %v55, %v55
    %v164 = vmul.f32 %v57, %v57
    %v165 = vmul.f32 %v59, %v59
    %v166 = vmul.f32 %v61, %v61
    %v175 = vcombine.low %v159, %v160
    %v176 = vcombine.low %v161, %v162
    %v177 = vcombine.low %v163, %v164
    %v178 = vcombine.low %v165, %v166
    %v183 = vsel %vm78, %v175, 0.0
    %184 = vadd.xlane.f32.xlu0 %v183
    %v185 = vpop.xlane.xlu0 %184
    %v186 = vsel %vm78, %v176, 0.0
    %187 = vadd.xlane.f32.xlu0 %v186
    %v188 = vpop.xlane.xlu0 %187
    %v189 = vsel %vm78, %v177, 0.0
    %190 = vadd.xlane.f32.xlu0 %v189
    %v191 = vpop.xlane.xlu0 %190
    %v192 = vsel %vm78, %v178, 0.0
    %193 = vadd.xlane.f32.xlu0 %v192
    %v194 = vpop.xlane.xlu0 %193
    %v195 = vadd.f32 %v117, %v185
    %v196 = vadd.f32 %v120, %v188
    %v197 = vadd.f32 %v123, %v191
    %v198 = vadd.f32 %v126, %v194
    %v199 = vmul.f32 %v155, 0.03125
    %v200 = vmul.f32 %v156, 0.03125
    %v201 = vmul.f32 %v157, 0.03125
    %v202 = vmul.f32 %v158, 0.03125
    %v203 = vmul.f32 %v195, 0.03125
    %v204 = vmul.f32 %v196, 0.03125
    %v205 = vmul.f32 %v197, 0.03125
    %v206 = vmul.f32 %v198, 0.03125
    %v207 = vmul.f32 %v199, %v199
    %v208 = vmul.f32 %v200, %v200
    %v209 = vmul.f32 %v201, %v201
    %v210 = vmul.f32 %v202, %v202
    %v211 = vsub.f32 %v203, %v207
    %v212 = vsub.f32 %v204, %v208
    %v213 = vsub.f32 %v205, %v209
    %v214 = vsub.f32 %v206, %v210
    %v215 = vadd.f32 %v211, 1e-05
    %v216 = vadd.f32 %v212, 1e-05
    %v217 = vadd.f32 %v213, 1e-05
    %v218 = vadd.f32 %v214, 1e-05
    %v219 = vrsqrt.pop %v215
    %v220 = vrsqrt.pop %v216
    %v221 = vrsqrt.pop %v217
    %v222 = vrsqrt.pop %v218
    %v223 = vld [vmem:[%s1] sm:$0x1]
    %v224 = vld [vmem:[%s2] sm:$0x1]
    %v230 = vunpack.c.l.s4 839922192
    %v231 = vunpack.c.0.s8 %v230
    %v232 = vlaneseq
    %v233 = vshrl.u32 %v232, 7
    %v234 = vsub.s32 %v231, %v233
    %v235 = vrot.slane %v199, %v234
    %v237 = vunpack.c.l.s4 1985246804
    %v238 = vunpack.c.0.s8 %v237
    %v239 = vlaneseq
    %v240 = vshrl.u32 %v239, 7
    %v241 = vsub.s32 %v238, %v240
    %v242 = vrot.slane %v199, %v241
    %v244 = vunpack.c.l.s4 839922192
    %v245 = vunpack.c.0.s8 %v244
    %v246 = vlaneseq
    %v247 = vshrl.u32 %v246, 7
    %v248 = vsub.s32 %v245, %v247
    %v249 = vrot.slane %v200, %v248
    %v251 = vunpack.c.l.s4 1985246804
    %v252 = vunpack.c.0.s8 %v251
    %v253 = vlaneseq
    %v254 = vshrl.u32 %v253, 7
    %v255 = vsub.s32 %v252, %v254
    %v256 = vrot.slane %v200, %v255
    %v258 = vunpack.c.l.s4 839922192
    %v259 = vunpack.c.0.s8 %v258
    %v260 = vlaneseq
    %v261 = vshrl.u32 %v260, 7
    %v262 = vsub.s32 %v259, %v261
    %v263 = vrot.slane %v201, %v262
    %v265 = vunpack.c.l.s4 1985246804
    %v266 = vunpack.c.0.s8 %v265
    %v267 = vlaneseq
    %v268 = vshrl.u32 %v267, 7
    %v269 = vsub.s32 %v266, %v268
    %v270 = vrot.slane %v201, %v269
    %v272 = vunpack.c.l.s4 839922192
    %v273 = vunpack.c.0.s8 %v272
    %v274 = vlaneseq
    %v275 = vshrl.u32 %v274, 7
    %v276 = vsub.s32 %v273, %v275
    %v277 = vrot.slane %v202, %v276
    %v279 = vunpack.c.l.s4 1985246804
    %v280 = vunpack.c.0.s8 %v279
    %v281 = vlaneseq
    %v282 = vshrl.u32 %v281, 7
    %v283 = vsub.s32 %v280, %v282
    %v284 = vrot.slane %v202, %v283
    %v293 = vsub.f32 %v46, %v235
    %v294 = vsub.f32 %v48, %v242
    %v295 = vsub.f32 %v50, %v249
    %v296 = vsub.f32 %v52, %v256
    %v297 = vsub.f32 %v54, %v263
    %v298 = vsub.f32 %v56, %v270
    %v299 = vsub.f32 %v58, %v277
    %v300 = vsub.f32 %v60, %v284
    %v306 = vunpack.c.l.s4 839922192
    %v307 = vunpack.c.0.s8 %v306
    %v308 = vlaneseq
    %v309 = vshrl.u32 %v308, 7
    %v310 = vsub.s32 %v307, %v309
    %v311 = vrot.slane %v219, %v310
    %v313 = vunpack.c.l.s4 1985246804
    %v314 = vunpack.c.0.s8 %v313
    %v315 = vlaneseq
    %v316 = vshrl.u32 %v315, 7
    %v317 = vsub.s32 %v314, %v316
    %v318 = vrot.slane %v219, %v317
    %v320 = vunpack.c.l.s4 839922192
    %v321 = vunpack.c.0.s8 %v320
    %v322 = vlaneseq
    %v323 = vshrl.u32 %v322, 7
    %v324 = vsub.s32 %v321, %v323
    %v325 = vrot.slane %v220, %v324
    %v327 = vunpack.c.l.s4 1985246804
    %v328 = vunpack.c.0.s8 %v327
    %v329 = vlaneseq
    %v330 = vshrl.u32 %v329, 7
    %v331 = vsub.s32 %v328, %v330
    %v332 = vrot.slane %v220, %v331
    %v334 = vunpack.c.l.s4 839922192
    %v335 = vunpack.c.0.s8 %v334
    %v336 = vlaneseq
    %v337 = vshrl.u32 %v336, 7
    %v338 = vsub.s32 %v335, %v337
    %v339 = vrot.slane %v221, %v338
    %v341 = vunpack.c.l.s4 1985246804
    %v342 = vunpack.c.0.s8 %v341
    %v343 = vlaneseq
    %v344 = vshrl.u32 %v343, 7
    %v345 = vsub.s32 %v342, %v344
    %v346 = vrot.slane %v221, %v345
    %v348 = vunpack.c.l.s4 839922192
    %v349 = vunpack.c.0.s8 %v348
    %v350 = vlaneseq
    %v351 = vshrl.u32 %v350, 7
    %v352 = vsub.s32 %v349, %v351
    %v353 = vrot.slane %v222, %v352
    %v355 = vunpack.c.l.s4 1985246804
    %v356 = vunpack.c.0.s8 %v355
    %v357 = vlaneseq
    %v358 = vshrl.u32 %v357, 7
    %v359 = vsub.s32 %v356, %v358
    %v360 = vrot.slane %v222, %v359
    %v369 = vmul.f32 %v293, %v311
    %v370 = vmul.f32 %v294, %v318
    %v371 = vmul.f32 %v295, %v325
    %v372 = vmul.f32 %v296, %v332
    %v373 = vmul.f32 %v297, %v339
    %v374 = vmul.f32 %v298, %v346
    %v375 = vmul.f32 %v299, %v353
    %v376 = vmul.f32 %v300, %v360
    %v378 = vlaneseq
    %v379 = vshrl.u32 %v378, 7
    %v380 = vsub.s32 0, %v379
    %v381 = vrot.slane %v223, %v380
    %v383 = vcombine.high %v381, %v381
    %v385 = vmul.f32 %v369, %v381
    %v386 = vmul.f32 %v370, %v383
    %v387 = vmul.f32 %v371, %v381
    %v388 = vmul.f32 %v372, %v383
    %v389 = vmul.f32 %v373, %v381
    %v390 = vmul.f32 %v374, %v383
    %v391 = vmul.f32 %v375, %v381
    %v392 = vmul.f32 %v376, %v383
    %v394 = vlaneseq
    %v395 = vshrl.u32 %v394, 7
    %v396 = vsub.s32 0, %v395
    %v397 = vrot.slane %v224, %v396
    %v399 = vcombine.high %v397, %v397
    %v401 = vadd.f32 %v385, %v397
    %v402 = vadd.f32 %v386, %v399
    %v403 = vadd.f32 %v387, %v397
    %v404 = vadd.f32 %v388, %v399
    %v405 = vadd.f32 %v389, %v397
    %v406 = vadd.f32 %v390, %v399
    %v407 = vadd.f32 %v391, %v397
    %v408 = vadd.f32 %v392, %v399
    %v409 = vld [vmem:[#allocation5] sm:$0xff]
    %v410 = vld [vmem:[#allocation5 + $0x8] sm:$0xff]
    %s411 = scalar_lea.vmem %s1, 1
    %v412 = vld [vmem:[%s411] sm:$0x1]
    %s413 = scalar_lea.vmem %s2, 1
    %v414 = vld [vmem:[%s413] sm:$0x1]
    %v415 = vsub.f32 %v47, %v235
    %v416 = vsub.f32 %v49, %v242
    %v417 = vsub.f32 %v51, %v249
    %v418 = vsub.f32 %v53, %v256
    %v419 = vsub.f32 %v55, %v263
    %v420 = vsub.f32 %v57, %v270
    %v421 = vsub.f32 %v59, %v277
    %v422 = vsub.f32 %v61, %v284
    %v423 = vmul.f32 %v415, %v311
    %v424 = vmul.f32 %v416, %v318
    %v425 = vmul.f32 %v417, %v325
    %v426 = vmul.f32 %v418, %v332
    %v427 = vmul.f32 %v419, %v339
    %v428 = vmul.f32 %v420, %v346
    %v429 = vmul.f32 %v421, %v353
    %v430 = vmul.f32 %v422, %v360
    %v432 = vlaneseq
    %v433 = vshrl.u32 %v432, 7
    %v434 = vsub.s32 0, %v433
    %v435 = vrot.slane %v412, %v434
    %v437 = vcombine.high %v435, %v435
    %v439 = vmul.f32 %v423, %v435
    %v440 = vmul.f32 %v424, %v437
    %v441 = vmul.f32 %v425, %v435
    %v442 = vmul.f32 %v426, %v437
    %v443 = vmul.f32 %v427, %v435
    %v444 = vmul.f32 %v428, %v437
    %v445 = vmul.f32 %v429, %v435
    %v446 = vmul.f32 %v430, %v437
    %v448 = vlaneseq
    %v449 = vshrl.u32 %v448, 7
    %v450 = vsub.s32 0, %v449
    %v451 = vrot.slane %v414, %v450
    %v453 = vcombine.high %v451, %v451
    %v455 = vadd.f32 %v439, %v451
    %v456 = vadd.f32 %v440, %v453
    %v457 = vadd.f32 %v441, %v451
    %v458 = vadd.f32 %v442, %v453
    %v459 = vadd.f32 %v443, %v451
    %v460 = vadd.f32 %v444, %v453
    %v461 = vadd.f32 %v445, %v451
    %v462 = vadd.f32 %v446, %v453
    %s463 = scalar_lea.vmem [#allocation5], 16
    %v464 = vld [vmem:[%s463] sm:$0xff]
    %v465 = vld [vmem:[%s463 + $0x8] sm:$0xff]
    %v474 = vcombine.low %v455, %v456
    %v475 = vcombine.low %v457, %v458
    %v476 = vcombine.low %v459, %v460
    %v477 = vcombine.low %v461, %v462
    %v478 = vsel %vm78, %v474, 0
    %v480 = vsel %vm78, %v475, 0
    %v482 = vsel %vm78, %v476, 0
    %v484 = vsel %vm78, %v477, 0
    %486 = vmatprep.subr.mxu0 0.0
    %487 = vmatpush1.msra.mxu0 %v464
    %488 = vmatprep.subr.mxu0 0.0
    %489 = vmatpush1.msra.mxu0 %v465
    %490 = vmatprep.subr.mxu0 0.0
    %491 = vmatpush1.msra.mxu0 0.0
    %492 = vmatprep.subr.mxu0 0.0
    %493 = vmatpush1.msra.mxu0 0.0
    %494 = vmatprep.subr.mxu0 0.0
    %495 = vmatpush1.msra.mxu0 0.0
    %496 = vmatprep.subr.mxu0 0.0
    %497 = vmatpush1.msra.mxu0 0.0
    %498 = vmatprep.subr.mxu0 0.0
    %499 = vmatpush1.msra.mxu0 0.0
    %500 = vmatprep.subr.mxu0 0.0
    %501 = vmatpush1.msra.mxu0 0.0
    %502 = vmatprep.subr.mxu0 0.0
    %503 = vmatpush1.msra.mxu0 0.0
    %504 = vmatprep.subr.mxu0 0.0
    %505 = vmatpush1.msra.mxu0 0.0
    %506 = vmatprep.subr.mxu0 0.0
    %507 = vmatpush1.msra.mxu0 0.0
    %508 = vmatprep.subr.mxu0 0.0
    %509 = vmatpush1.msra.mxu0 0.0
    %510 = vmatprep.subr.mxu0 0.0
    %511 = vmatpush1.msra.mxu0 0.0
    %512 = vmatprep.subr.mxu0 0.0
    %513 = vmatpush1.msra.mxu0 0.0
    %514 = vmatprep.subr.mxu0 0.0
    %515 = vmatpush1.msra.mxu0 0.0
    %516 = vmatprep.subr.mxu0 0.0
    %517 = vmatpush1.msra.mxu0 0.0
    %518 = vmatprep.subr.mxu0 0.0
    %519 = vmatpush1.msra.mxu0 0.0
    %520 = vmatprep.subr.mxu0 0.0
    %521 = vmatpush1.msra.mxu0 0.0
    %522 = vmatprep.subr.mxu0 0.0
    %523 = vmatpush1.msra.mxu0 0.0
    %524 = vmatprep.subr.mxu0 0.0
    %525 = vmatpush1.msra.mxu0 0.0
    %526 = vmatprep.subr.mxu0 0.0
    %527 = vmatpush1.msra.mxu0 0.0
    %528 = vmatprep.subr.mxu0 0.0
    %529 = vmatpush1.msra.mxu0 0.0
    %530 = vmatprep.subr.mxu0 0.0
    %531 = vmatpush1.msra.mxu0 0.0
    %532 = vmatprep.subr.mxu0 0.0
    %533 = vmatpush1.msra.mxu0 0.0
    %534 = vmatprep.subr.mxu0 0.0
    %535 = vmatpush1.msra.mxu0 0.0
    %536 = vmatprep.subr.mxu0 0.0
    %537 = vmatpush1.msra.mxu0 0.0
    %538 = vmatprep.subr.mxu0 0.0
    %539 = vmatpush1.msra.mxu0 0.0
    %540 = vmatprep.subr.mxu0 0.0
    %541 = vmatpush1.msra.mxu0 0.0
    %542 = vmatprep.subr.mxu0 0.0
    %543 = vmatpush1.msra.mxu0 0.0
    %544 = vmatprep.subr.mxu0 0.0
    %545 = vmatpush1.msra.mxu0 0.0
    %546 = vmatprep.subr.mxu0 0.0
    %547 = vmatpush1.msra.mxu0 0.0
    %548 = vmatprep.subr.mxu0 0.0
    %549 = vmatpush1.msra.mxu0 0.0
    %550 = vmatprep.mubr.f32.mxu0 0.0
    %551 = vmatmul.mubr.f32.gmra.mrb[0].mxu0 %v478
    %v552 = vpop.f32.mrb[0].mxu0
    %v553 = vadd.f32 0.0, %v552
    %v554 = vpop.f32.mrb[0].mxu0
    %555 = vmatprep.mubr.f32.mxu0 0.0
    %556 = vmatmul.mubr.f32.gmra.mrb[0].mxu0 %v480
    %v557 = vpop.f32.mrb[0].mxu0
    %v558 = vadd.f32 0.0, %v557
    %v559 = vpop.f32.mrb[0].mxu0
    %560 = vmatprep.mubr.f32.mxu0 0.0
    %561 = vmatmul.mubr.f32.gmra.mrb[0].mxu0 %v482
    %v562 = vpop.f32.mrb[0].mxu0
    %v563 = vadd.f32 0.0, %v562
    %v564 = vpop.f32.mrb[0].mxu0
    %565 = vmatprep.mubr.f32.mxu0 0.0
    %566 = vmatmul.mubr.f32.gmra.mrb[0].mxu0 %v484
    %v567 = vpop.f32.mrb[0].mxu0
    %v568 = vadd.f32 0.0, %v567
    %v569 = vpop.f32.mrb[0].mxu0
    %570 = vdwg.mxu0
    %v579 = vcombine.low %v401, %v402
    %v580 = vcombine.low %v403, %v404
    %v581 = vcombine.low %v405, %v406
    %v582 = vcombine.low %v407, %v408
    %v583 = vsel %vm78, %v579, 0
    %v585 = vsel %vm78, %v580, 0
    %v587 = vsel %vm78, %v581, 0
    %v589 = vsel %vm78, %v582, 0
    %591 = vmatprep.subr.mxu0 0.0
    %592 = vmatpush1.msra.mxu0 %v409
    %593 = vmatprep.subr.mxu0 0.0
    %594 = vmatpush1.msra.mxu0 %v410
    %595 = vmatprep.subr.mxu0 0.0
    %596 = vmatpush1.msra.mxu0 0.0
    %597 = vmatprep.subr.mxu0 0.0
    %598 = vmatpush1.msra.mxu0 0.0
    %599 = vmatprep.subr.mxu0 0.0
    %600 = vmatpush1.msra.mxu0 0.0
    %601 = vmatprep.subr.mxu0 0.0
    %602 = vmatpush1.msra.mxu0 0.0
    %603 = vmatprep.subr.mxu0 0.0
    %604 = vmatpush1.msra.mxu0 0.0
    %605 = vmatprep.subr.mxu0 0.0
    %606 = vmatpush1.msra.mxu0 0.0
    %607 = vmatprep.subr.mxu0 0.0
    %608 = vmatpush1.msra.mxu0 0.0
    %609 = vmatprep.subr.mxu0 0.0
    %610 = vmatpush1.msra.mxu0 0.0
    %611 = vmatprep.subr.mxu0 0.0
    %612 = vmatpush1.msra.mxu0 0.0
    %613 = vmatprep.subr.mxu0 0.0
    %614 = vmatpush1.msra.mxu0 0.0
    %615 = vmatprep.subr.mxu0 0.0
    %616 = vmatpush1.msra.mxu0 0.0
    %617 = vmatprep.subr.mxu0 0.0
    %618 = vmatpush1.msra.mxu0 0.0
    %619 = vmatprep.subr.mxu0 0.0
    %620 = vmatpush1.msra.mxu0 0.0
    %621 = vmatprep.subr.mxu0 0.0
    %622 = vmatpush1.msra.mxu0 0.0
    %623 = vmatprep.subr.mxu0 0.0
    %624 = vmatpush1.msra.mxu0 0.0
    %625 = vmatprep.subr.mxu0 0.0
    %626 = vmatpush1.msra.mxu0 0.0
    %627 = vmatprep.subr.mxu0 0.0
    %628 = vmatpush1.msra.mxu0 0.0
    %629 = vmatprep.subr.mxu0 0.0
    %630 = vmatpush1.msra.mxu0 0.0
    %631 = vmatprep.subr.mxu0 0.0
    %632 = vmatpush1.msra.mxu0 0.0
    %633 = vmatprep.subr.mxu0 0.0
    %634 = vmatpush1.msra.mxu0 0.0
    %635 = vmatprep.subr.mxu0 0.0
    %636 = vmatpush1.msra.mxu0 0.0
    %637 = vmatprep.subr.mxu0 0.0
    %638 = vmatpush1.msra.mxu0 0.0
    %639 = vmatprep.subr.mxu0 0.0
    %640 = vmatpush1.msra.mxu0 0.0
    %641 = vmatprep.subr.mxu0 0.0
    %642 = vmatpush1.msra.mxu0 0.0
    %643 = vmatprep.subr.mxu0 0.0
    %644 = vmatpush1.msra.mxu0 0.0
    %645 = vmatprep.subr.mxu0 0.0
    %646 = vmatpush1.msra.mxu0 0.0
    %647 = vmatprep.subr.mxu0 0.0
    %648 = vmatpush1.msra.mxu0 0.0
    %649 = vmatprep.subr.mxu0 0.0
    %650 = vmatpush1.msra.mxu0 0.0
    %651 = vmatprep.subr.mxu0 0.0
    %652 = vmatpush1.msra.mxu0 0.0
    %653 = vmatprep.subr.mxu0 0.0
    %654 = vmatpush1.msra.mxu0 0.0
    %655 = vmatprep.mubr.f32.mxu0 0.0
    %656 = vmatmul.mubr.f32.gmra.mrb[0].mxu0 %v583
    %v657 = vpop.f32.mrb[0].mxu0
    %v658 = vadd.f32 %v553, %v657
    %v659 = vpop.f32.mrb[0].mxu0
    %660 = vmatprep.mubr.f32.mxu0 0.0
    %661 = vmatmul.mubr.f32.gmra.mrb[0].mxu0 %v585
    %v662 = vpop.f32.mrb[0].mxu0
    %v663 = vadd.f32 %v558, %v662
    %v664 = vpop.f32.mrb[0].mxu0
    %665 = vmatprep.mubr.f32.mxu0 0.0
    %666 = vmatmul.mubr.f32.gmra.mrb[0].mxu0 %v587
    %v667 = vpop.f32.mrb[0].mxu0
    %v668 = vadd.f32 %v563, %v667
    %v669 = vpop.f32.mrb[0].mxu0
    %670 = vmatprep.mubr.f32.mxu0 0.0
    %671 = vmatmul.mubr.f32.gmra.mrb[0].mxu0 %v589
    %v672 = vpop.f32.mrb[0].mxu0
    %v673 = vadd.f32 %v568, %v672
    %v674 = vpop.f32.mrb[0].mxu0
    %675 = vdwg.mxu0
    %vm676 = vcmask 261120
    %677 = vst.msk [vmem:[#allocation7] sm:$0xff] %vm676, %v658
    %678 = vst.msk [vmem:[#allocation7 + $0x8] sm:$0xff] %vm676, %v663
    %679 = vst.msk [vmem:[#allocation7 + $0x10] sm:$0xff] %vm676, %v668
    %680 = vst.msk [vmem:[#allocation7 + $0x18] sm:$0xff] %vm676, %v673
    // Predicated region
    $region26: #{tpu_custom_call.1} parent=1 // pred_check
      _
    $region27: #{tpu_custom_call.1} parent=1 // pred_check_branch
      %682 = sbr.rel (0) target = $region29
    $region28: #{tpu_custom_call.1} parent=1 // pred_region
      %s684 = ssub.s32 512, 512
      %685 = vsyncadd [#allocation4], %s684
      %s686 = sshll.u32 [#allocation7], 4
      %s687 = int_to_ptr.vmem [resolvable:$true] %s686
      %692 = dma.vmem_to_hbm [thread:$0]  %s687, 512, %s4, [#allocation4], 128, 128, 8
    $region29: #{tpu_custom_call.1} parent=1 // pred_fallthru
      _
    // Predicated region
    $region30: #{tpu_custom_call.1} parent=1 // pred_check
      _
    $region31: #{tpu_custom_call.1} parent=1 // pred_check_branch
      %694 = sbr.rel (0) target = $region33
    $region32: #{tpu_custom_call.1} parent=1 // pred_region
      %695 = dma.done [#allocation4], 512
    $region33: #{tpu_custom_call.1} parent=1 // pred_fallthru
      _
    %696 = vsyncpa [#allocation3], 1
    %697 = vsyncpa [#allocation6], 1
    %698 = vsyncpa [#allocation4], 1

// kernel: tpu_custom_call.1
$region0: #{tpu_custom_call.1}
  #allocation0 [shape = 'u32[]', space=smem, size = 0x4, offset = 0x4, fixed_abs, tag = 'smem constant byte address 0x4 - core index']
  #allocation1 [shape = 'u32[144,128]{1,0:T(1,128)}', space=vmem, size = 0x12000, scoped, tag = 'internal scratch']
  %s0 = inlined_call_operand.hbm [shape: f32[8,2,4,16], index: 0, kind: input, shape index: {}]
  %s1 = inlined_call_operand.vmem [shape: f32[2,1,16], index: 1, kind: input, shape index: {}]
  %s2 = inlined_call_operand.vmem [shape: f32[2,1,16], index: 2, kind: input, shape index: {}]
  %s3 = inlined_call_operand.hbm [shape: f32[2,16,32], index: 3, kind: input, shape index: {}]
  %s4 = inlined_call_operand.hbm [shape: f32[32,32], index: 4, kind: output, shape index: {}]
  %s5 = sld [smem:[#allocation0]]
  $region34: #{tpu_custom_call.1} parent=0
    _
  %s7 = ssub.s32 1, %s5
  %s8 = scalar_select 0, %s7, %s5
  $region1: #{tpu_custom_call.1} parent=0
    #allocation2 [shape = 'u8[32768]{0}', space=vmem, size = 0x8000, scoped, tag = 'input window, operand 0, single buffered']
    #allocation3 [shape = 's32[1]{0}', space=sflag, size = 0x4, scoped, tag = 'scoped memory for tpu_custom_call.1']
    #allocation4 [shape = 's32[1]{0}', space=sflag, size = 0x4, scoped, tag = 'scoped memory for tpu_custom_call.1']
    #allocation5 [shape = 'u8[16384]{0}', space=vmem, size = 0x4000, scoped, tag = 'input window, operand 3, single buffered']
    #allocation6 [shape = 's32[1]{0}', space=sflag, size = 0x4, scoped, tag = 'scoped memory for tpu_custom_call.1']
    #allocation7 [shape = 'u8[16384]{0}', space=vmem, size = 0x4000, scoped, tag = 'output window, operand 0, single buffered']
    %9 = vsyncpa [#allocation3], 0
    %10 = vsyncpa [#allocation6], 0
    %11 = vsyncpa [#allocation4], 0
    // Predicated region
    $region2: #{tpu_custom_call.1} parent=1 // pred_check
      _
    $region3: #{tpu_custom_call.1} parent=1 // pred_check_branch
      %13 = sbr.rel (0) target = $region5
    $region4: #{tpu_custom_call.1} parent=1 // pred_region
      %s15 = ssub.s32 1024, 1024
      %16 = vsyncadd [#allocation3], %s15
      %s17 = sshll.u32 [#allocation2], 4
      %s18 = int_to_ptr.vmem [resolvable:$true] %s17
      %23 = dma.hbm_to_vmem [thread:$0]  %s0, 1024, %s18, [#allocation3], 64, 64, 4
    $region5: #{tpu_custom_call.1} parent=1 // pred_fallthru
      _
    // Predicated region
    $region6: #{tpu_custom_call.1} parent=1 // pred_check
      _
    $region7: #{tpu_custom_call.1} parent=1 // pred_check_branch
      %25 = sbr.rel (0) target = $region9
    $region8: #{tpu_custom_call.1} parent=1 // pred_region
      _
    $region9: #{tpu_custom_call.1} parent=1 // pred_fallthru
      _
    // Predicated region
    $region10: #{tpu_custom_call.1} parent=1 // pred_check
      _
    $region11: #{tpu_custom_call.1} parent=1 // pred_check_branch
      %27 = sbr.rel (0) target = $region13
    $region12: #{tpu_custom_call.1} parent=1 // pred_region
      _
    $region13: #{tpu_custom_call.1} parent=1 // pred_fallthru
      _
    // Predicated region
    $region14: #{tpu_custom_call.1} parent=1 // pred_check
      _
    $region15: #{tpu_custom_call.1} parent=1 // pred_check_branch
      %29 = sbr.rel (0) target = $region17
    $region16: #{tpu_custom_call.1} parent=1 // pred_region
      %s31 = ssub.s32 512, 512
      %32 = vsyncadd [#allocation6], %s31
      %s33 = sshll.u32 [#allocation5], 4
      %s34 = int_to_ptr.vmem [resolvable:$true] %s33
      %39 = dma.hbm_to_vmem [thread:$0]  %s3, 512, %s34, [#allocation6], 128, 128, 8
    $region17: #{tpu_custom_call.1} parent=1 // pred_fallthru
      _
    // Predicated region
    $region18: #{tpu_custom_call.1} parent=1 // pred_check
      _
    $region19: #{tpu_custom_call.1} parent=1 // pred_check_branch
      %41 = sbr.rel (0) target = $region21
    $region20: #{tpu_custom_call.1} parent=1 // pred_region
      %42 = dma.done [#allocation3], 1024
    $region21: #{tpu_custom_call.1} parent=1 // pred_fallthru
      _
    // Predicated region
    $region22: #{tpu_custom_call.1} parent=1 // pred_check
      _
    $region23: #{tpu_custom_call.1} parent=1 // pred_check_branch
      %44 = sbr.rel (0) target = $region25
    $region24: #{tpu_custom_call.1} parent=1 // pred_region
      %45 = dma.done [#allocation6], 512
    $region25: #{tpu_custom_call.1} parent=1 // pred_fallthru
      _
    %v46 = vld [vmem:[#allocation2] sm:$0xf]
    %v47 = vld [vmem:[#allocation2 + $0x4] sm:$0xf]
    %v48 = vld [vmem:[#allocation2 + $0x8] sm:$0xf]
    %v49 = vld [vmem:[#allocation2 + $0xc] sm:$0xf]
    %v50 = vld [vmem:[#allocation2 + $0x10] sm:$0xf]
    %v51 = vld [vmem:[#allocation2 + $0x14] sm:$0xf]
    %v52 = vld [vmem:[#allocation2 + $0x18] sm:$0xf]
    %v53 = vld [vmem:[#allocation2 + $0x1c] sm:$0xf]
    %v54 = vld [vmem:[#allocation2 + $0x20] sm:$0xf]
    %v55 = vld [vmem:[#allocation2 + $0x24] sm:$0xf]
    %v56 = vld [vmem:[#allocation2 + $0x28] sm:$0xf]
    %v57 = vld [vmem:[#allocation2 + $0x2c] sm:$0xf]
    %v58 = vld [vmem:[#allocation2 + $0x30] sm:$0xf]
    %v59 = vld [vmem:[#allocation2 + $0x34] sm:$0xf]
    %v60 = vld [vmem:[#allocation2 + $0x38] sm:$0xf]
    %v61 = vld [vmem:[#allocation2 + $0x3c] sm:$0xf]
    %v70 = vcombine.low %v46, %v48
    %v71 = vcombine.low %v50, %v52
    %v72 = vcombine.low %v54, %v56
    %v73 = vcombine.low %v58, %v60
    %vm78 = vcmask 130048
    %v79 = vsel %vm78, %v70, 0.0
    %80 = vadd.xlane.f32.xlu0 %v79
    %v81 = vpop.xlane.xlu0 %80
    %v82 = vsel %vm78, %v71, 0.0
    %83 = vadd.xlane.f32.xlu0 %v82
    %v84 = vpop.xlane.xlu0 %83
    %v85 = vsel %vm78, %v72, 0.0
    %86 = vadd.xlane.f32.xlu0 %v85
    %v87 = vpop.xlane.xlu0 %86
    %v88 = vsel %vm78, %v73, 0.0
    %89 = vadd.xlane.f32.xlu0 %v88
    %v90 = vpop.xlane.xlu0 %89
    %v91 = vmul.f32 %v46, %v46
    %v92 = vmul.f32 %v48, %v48
    %v93 = vmul.f32 %v50, %v50
    %v94 = vmul.f32 %v52, %v52
    %v95 = vmul.f32 %v54, %v54
    %v96 = vmul.f32 %v56, %v56
    %v97 = vmul.f32 %v58, %v58
    %v98 = vmul.f32 %v60, %v60
    %v107 = vcombine.low %v91, %v92
    %v108 = vcombine.low %v93, %v94
    %v109 = vcombine.low %v95, %v96
    %v110 = vcombine.low %v97, %v98
    %v115 = vsel %vm78, %v107, 0.0
    %116 = vadd.xlane.f32.xlu0 %v115
    %v117 = vpop.xlane.xlu0 %116
    %v118 = vsel %vm78, %v108, 0.0
    %119 = vadd.xlane.f32.xlu0 %v118
    %v120 = vpop.xlane.xlu0 %119
    %v121 = vsel %vm78, %v109, 0.0
    %122 = vadd.xlane.f32.xlu0 %v121
    %v123 = vpop.xlane.xlu0 %122
    %v124 = vsel %vm78, %v110, 0.0
    %125 = vadd.xlane.f32.xlu0 %v124
    %v126 = vpop.xlane.xlu0 %125
    %v135 = vcombine.low %v47, %v49
    %v136 = vcombine.low %v51, %v53
    %v137 = vcombine.low %v55, %v57
    %v138 = vcombine.low %v59, %v61
    %v143 = vsel %vm78, %v135, 0.0
    %144 = vadd.xlane.f32.xlu0 %v143
    %v145 = vpop.xlane.xlu0 %144
    %v146 = vsel %vm78, %v136, 0.0
    %147 = vadd.xlane.f32.xlu0 %v146
    %v148 = vpop.xlane.xlu0 %147
    %v149 = vsel %vm78, %v137, 0.0
    %150 = vadd.xlane.f32.xlu0 %v149
    %v151 = vpop.xlane.xlu0 %150
    %v152 = vsel %vm78, %v138, 0.0
    %153 = vadd.xlane.f32.xlu0 %v152
    %v154 = vpop.xlane.xlu0 %153
    %v155 = vadd.f32 %v81, %v145
    %v156 = vadd.f32 %v84, %v148
    %v157 = vadd.f32 %v87, %v151
    %v158 = vadd.f32 %v90, %v154
    %v159 = vmul.f32 %v47, %v47
    %v160 = vmul.f32 %v49, %v49
    %v161 = vmul.f32 %v51, %v51
    %v162 = vmul.f32 %v53, %v53
    %v163 = vmul.f32 %v55, %v55
    %v164 = vmul.f32 %v57, %v57
    %v165 = vmul.f32 %v59, %v59
    %v166 = vmul.f32 %v61, %v61
    %v175 = vcombine.low %v159, %v160
    %v176 = vcombine.low %v161, %v162
    %v177 = vcombine.low %v163, %v164
    %v178 = vcombine.low %v165, %v166
    %v183 = vsel %vm78, %v175, 0.0
    %184 = vadd.xlane.f32.xlu0 %v183
    %v185 = vpop.xlane.xlu0 %184
    %v186 = vsel %vm78, %v176, 0.0
    %187 = vadd.xlane.f32.xlu0 %v186
    %v188 = vpop.xlane.xlu0 %187
    %v189 = vsel %vm78, %v177, 0.0
    %190 = vadd.xlane.f32.xlu0 %v189
    %v191 = vpop.xlane.xlu0 %190
    %v192 = vsel %vm78, %v178, 0.0
    %193 = vadd.xlane.f32.xlu0 %v192
    %v194 = vpop.xlane.xlu0 %193
    %v195 = vadd.f32 %v117, %v185
    %v196 = vadd.f32 %v120, %v188
    %v197 = vadd.f32 %v123, %v191
    %v198 = vadd.f32 %v126, %v194
    %v199 = vmul.f32 %v155, 0.03125
    %v200 = vmul.f32 %v156, 0.03125
    %v201 = vmul.f32 %v157, 0.03125
    %v202 = vmul.f32 %v158, 0.03125
    %v203 = vmul.f32 %v195, 0.03125
    %v204 = vmul.f32 %v196, 0.03125
    %v205 = vmul.f32 %v197, 0.03125
    %v206 = vmul.f32 %v198, 0.03125
    %v207 = vmul.f32 %v199, %v199
    %v208 = vmul.f32 %v200, %v200
    %v209 = vmul.f32 %v201, %v201
    %v210 = vmul.f32 %v202, %v202
    %v211 = vsub.f32 %v203, %v207
    %v212 = vsub.f32 %v204, %v208
    %v213 = vsub.f32 %v205, %v209
    %v214 = vsub.f32 %v206, %v210
    %v215 = vadd.f32 %v211, 1e-05
    %v216 = vadd.f32 %v212, 1e-05
    %v217 = vadd.f32 %v213, 1e-05
    %v218 = vadd.f32 %v214, 1e-05
    %v219 = vrsqrt.pop %v215
    %v220 = vrsqrt.pop %v216
    %v221 = vrsqrt.pop %v217
    %v222 = vrsqrt.pop %v218
    %v223 = vld [vmem:[%s1] sm:$0x1]
    %v224 = vld [vmem:[%s2] sm:$0x1]
    %v230 = vunpack.c.l.s4 839922192
    %v231 = vunpack.c.0.s8 %v230
    %v232 = vlaneseq
    %v233 = vshrl.u32 %v232, 7
    %v234 = vsub.s32 %v231, %v233
    %v235 = vrot.slane %v199, %v234
    %v237 = vunpack.c.l.s4 1985246804
    %v238 = vunpack.c.0.s8 %v237
    %v239 = vlaneseq
    %v240 = vshrl.u32 %v239, 7
    %v241 = vsub.s32 %v238, %v240
    %v242 = vrot.slane %v199, %v241
    %v244 = vunpack.c.l.s4 839922192
    %v245 = vunpack.c.0.s8 %v244
    %v246 = vlaneseq
    %v247 = vshrl.u32 %v246, 7
    %v248 = vsub.s32 %v245, %v247
    %v249 = vrot.slane %v200, %v248
    %v251 = vunpack.c.l.s4 1985246804
    %v252 = vunpack.c.0.s8 %v251
    %v253 = vlaneseq
    %v254 = vshrl.u32 %v253, 7
    %v255 = vsub.s32 %v252, %v254
    %v256 = vrot.slane %v200, %v255
    %v258 = vunpack.c.l.s4 839922192
    %v259 = vunpack.c.0.s8 %v258
    %v260 = vlaneseq
    %v261 = vshrl.u32 %v260, 7
    %v262 = vsub.s32 %v259, %v261
    %v263 = vrot.slane %v201, %v262
    %v265 = vunpack.c.l.s4 1985246804
    %v266 = vunpack.c.0.s8 %v265
    %v267 = vlaneseq
    %v268 = vshrl.u32 %v267, 7
    %v269 = vsub.s32 %v266, %v268
    %v270 = vrot.slane %v201, %v269
    %v272 = vunpack.c.l.s4 839922192
    %v273 = vunpack.c.0.s8 %v272
    %v274 = vlaneseq
    %v275 = vshrl.u32 %v274, 7
    %v276 = vsub.s32 %v273, %v275
    %v277 = vrot.slane %v202, %v276
    %v279 = vunpack.c.l.s4 1985246804
    %v280 = vunpack.c.0.s8 %v279
    %v281 = vlaneseq
    %v282 = vshrl.u32 %v281, 7
    %v283 = vsub.s32 %v280, %v282
    %v284 = vrot.slane %v202, %v283
    %v293 = vsub.f32 %v46, %v235
    %v294 = vsub.f32 %v48, %v242
    %v295 = vsub.f32 %v50, %v249
    %v296 = vsub.f32 %v52, %v256
    %v297 = vsub.f32 %v54, %v263
    %v298 = vsub.f32 %v56, %v270
    %v299 = vsub.f32 %v58, %v277
    %v300 = vsub.f32 %v60, %v284
    %v306 = vunpack.c.l.s4 839922192
    %v307 = vunpack.c.0.s8 %v306
    %v308 = vlaneseq
    %v309 = vshrl.u32 %v308, 7
    %v310 = vsub.s32 %v307, %v309
    %v311 = vrot.slane %v219, %v310
    %v313 = vunpack.c.l.s4 1985246804
    %v314 = vunpack.c.0.s8 %v313
    %v315 = vlaneseq
    %v316 = vshrl.u32 %v315, 7
    %v317 = vsub.s32 %v314, %v316
    %v318 = vrot.slane %v219, %v317
    %v320 = vunpack.c.l.s4 839922192
    %v321 = vunpack.c.0.s8 %v320
    %v322 = vlaneseq
    %v323 = vshrl.u32 %v322, 7
    %v324 = vsub.s32 %v321, %v323
    %v325 = vrot.slane %v220, %v324
    %v327 = vunpack.c.l.s4 1985246804
    %v328 = vunpack.c.0.s8 %v327
    %v329 = vlaneseq
    %v330 = vshrl.u32 %v329, 7
    %v331 = vsub.s32 %v328, %v330
    %v332 = vrot.slane %v220, %v331
    %v334 = vunpack.c.l.s4 839922192
    %v335 = vunpack.c.0.s8 %v334
    %v336 = vlaneseq
    %v337 = vshrl.u32 %v336, 7
    %v338 = vsub.s32 %v335, %v337
    %v339 = vrot.slane %v221, %v338
    %v341 = vunpack.c.l.s4 1985246804
    %v342 = vunpack.c.0.s8 %v341
    %v343 = vlaneseq
    %v344 = vshrl.u32 %v343, 7
    %v345 = vsub.s32 %v342, %v344
    %v346 = vrot.slane %v221, %v345
    %v348 = vunpack.c.l.s4 839922192
    %v349 = vunpack.c.0.s8 %v348
    %v350 = vlaneseq
    %v351 = vshrl.u32 %v350, 7
    %v352 = vsub.s32 %v349, %v351
    %v353 = vrot.slane %v222, %v352
    %v355 = vunpack.c.l.s4 1985246804
    %v356 = vunpack.c.0.s8 %v355
    %v357 = vlaneseq
    %v358 = vshrl.u32 %v357, 7
    %v359 = vsub.s32 %v356, %v358
    %v360 = vrot.slane %v222, %v359
    %v369 = vmul.f32 %v293, %v311
    %v370 = vmul.f32 %v294, %v318
    %v371 = vmul.f32 %v295, %v325
    %v372 = vmul.f32 %v296, %v332
    %v373 = vmul.f32 %v297, %v339
    %v374 = vmul.f32 %v298, %v346
    %v375 = vmul.f32 %v299, %v353
    %v376 = vmul.f32 %v300, %v360
    %v378 = vlaneseq
    %v379 = vshrl.u32 %v378, 7
    %v380 = vsub.s32 0, %v379
    %v381 = vrot.slane %v223, %v380
    %v383 = vcombine.high %v381, %v381
    %v385 = vmul.f32 %v369, %v381
    %v386 = vmul.f32 %v370, %v383
    %v387 = vmul.f32 %v371, %v381
    %v388 = vmul.f32 %v372, %v383
    %v389 = vmul.f32 %v373, %v381
    %v390 = vmul.f32 %v374, %v383
    %v391 = vmul.f32 %v375, %v381
    %v392 = vmul.f32 %v376, %v383
    %v394 = vlaneseq
    %v395 = vshrl.u32 %v394, 7
    %v396 = vsub.s32 0, %v395
    %v397 = vrot.slane %v224, %v396
    %v399 = vcombine.high %v397, %v397
    %v401 = vadd.f32 %v385, %v397
    %v402 = vadd.f32 %v386, %v399
    %v403 = vadd.f32 %v387, %v397
    %v404 = vadd.f32 %v388, %v399
    %v405 = vadd.f32 %v389, %v397
    %v406 = vadd.f32 %v390, %v399
    %v407 = vadd.f32 %v391, %v397
    %v408 = vadd.f32 %v392, %v399
    %v409 = vld [vmem:[#allocation5] sm:$0xff]
    %v410 = vld [vmem:[#allocation5 + $0x8] sm:$0xff]
    %s411 = scalar_lea.vmem %s1, 1
    %v412 = vld [vmem:[%s411] sm:$0x1]
    %s413 = scalar_lea.vmem %s2, 1
    %v414 = vld [vmem:[%s413] sm:$0x1]
    %v415 = vsub.f32 %v47, %v235
    %v416 = vsub.f32 %v49, %v242
    %v417 = vsub.f32 %v51, %v249
    %v418 = vsub.f32 %v53, %v256
    %v419 = vsub.f32 %v55, %v263
    %v420 = vsub.f32 %v57, %v270
    %v421 = vsub.f32 %v59, %v277
    %v422 = vsub.f32 %v61, %v284
    %v423 = vmul.f32 %v415, %v311
    %v424 = vmul.f32 %v416, %v318
    %v425 = vmul.f32 %v417, %v325
    %v426 = vmul.f32 %v418, %v332
    %v427 = vmul.f32 %v419, %v339
    %v428 = vmul.f32 %v420, %v346
    %v429 = vmul.f32 %v421, %v353
    %v430 = vmul.f32 %v422, %v360
    %v432 = vlaneseq
    %v433 = vshrl.u32 %v432, 7
    %v434 = vsub.s32 0, %v433
    %v435 = vrot.slane %v412, %v434
    %v437 = vcombine.high %v435, %v435
    %v439 = vmul.f32 %v423, %v435
    %v440 = vmul.f32 %v424, %v437
    %v441 = vmul.f32 %v425, %v435
    %v442 = vmul.f32 %v426, %v437
    %v443 = vmul.f32 %v427, %v435
    %v444 = vmul.f32 %v428, %v437
    %v445 = vmul.f32 %v429, %v435
    %v446 = vmul.f32 %v430, %v437
    %v448 = vlaneseq
    %v449 = vshrl.u32 %v448, 7
    %v450 = vsub.s32 0, %v449
    %v451 = vrot.slane %v414, %v450
    %v453 = vcombine.high %v451, %v451
    %v455 = vadd.f32 %v439, %v451
    %v456 = vadd.f32 %v440, %v453
    %v457 = vadd.f32 %v441, %v451
    %v458 = vadd.f32 %v442, %v453
    %v459 = vadd.f32 %v443, %v451
    %v460 = vadd.f32 %v444, %v453
    %v461 = vadd.f32 %v445, %v451
    %v462 = vadd.f32 %v446, %v453
    %s463 = scalar_lea.vmem [#allocation5], 16
    %v464 = vld [vmem:[%s463] sm:$0xff]
    %v465 = vld [vmem:[%s463 + $0x8] sm:$0xff]
    %v474 = vcombine.low %v455, %v456
    %v475 = vcombine.low %v457, %v458
    %v476 = vcombine.low %v459, %v460
    %v477 = vcombine.low %v461, %v462
    %v478 = vsel %vm78, %v474, 0
    %v480 = vsel %vm78, %v475, 0
    %v482 = vsel %vm78, %v476, 0
    %v484 = vsel %vm78, %v477, 0
    %486 = vmatprep.subr.mxu0 0.0
    %487 = vmatpush1.msra.mxu0 %v464
    %488 = vmatprep.subr.mxu0 0.0
    %489 = vmatpush1.msra.mxu0 %v465
    %490 = vmatprep.subr.mxu0 0.0
    %491 = vmatpush1.msra.mxu0 0.0
    %492 = vmatprep.subr.mxu0 0.0
    %493 = vmatpush1.msra.mxu0 0.0
    %494 = vmatprep.subr.mxu0 0.0
    %495 = vmatpush1.msra.mxu0 0.0
    %496 = vmatprep.subr.mxu0 0.0
    %497 = vmatpush1.msra.mxu0 0.0
    %498 = vmatprep.subr.mxu0 0.0
    %499 = vmatpush1.msra.mxu0 0.0
    %500 = vmatprep.subr.mxu0 0.0
    %501 = vmatpush1.msra.mxu0 0.0
    %502 = vmatprep.subr.mxu0 0.0
    %503 = vmatpush1.msra.mxu0 0.0
    %504 = vmatprep.subr.mxu0 0.0
    %505 = vmatpush1.msra.mxu0 0.0
    %506 = vmatprep.subr.mxu0 0.0
    %507 = vmatpush1.msra.mxu0 0.0
    %508 = vmatprep.subr.mxu0 0.0
    %509 = vmatpush1.msra.mxu0 0.0
    %510 = vmatprep.subr.mxu0 0.0
    %511 = vmatpush1.msra.mxu0 0.0
    %512 = vmatprep.subr.mxu0 0.0
    %513 = vmatpush1.msra.mxu0 0.0
    %514 = vmatprep.subr.mxu0 0.0
    %515 = vmatpush1.msra.mxu0 0.0
    %516 = vmatprep.subr.mxu0 0.0
    %517 = vmatpush1.msra.mxu0 0.0
    %518 = vmatprep.subr.mxu0 0.0
    %519 = vmatpush1.msra.mxu0 0.0
    %520 = vmatprep.subr.mxu0 0.0
    %521 = vmatpush1.msra.mxu0 0.0
    %522 = vmatprep.subr.mxu0 0.0
    %523 = vmatpush1.msra.mxu0 0.0
    %524 = vmatprep.subr.mxu0 0.0
    %525 = vmatpush1.msra.mxu0 0.0
    %526 = vmatprep.subr.mxu0 0.0
    %527 = vmatpush1.msra.mxu0 0.0
    %528 = vmatprep.subr.mxu0 0.0
    %529 = vmatpush1.msra.mxu0 0.0
    %530 = vmatprep.subr.mxu0 0.0
    %531 = vmatpush1.msra.mxu0 0.0
    %532 = vmatprep.subr.mxu0 0.0
    %533 = vmatpush1.msra.mxu0 0.0
    %534 = vmatprep.subr.mxu0 0.0
    %535 = vmatpush1.msra.mxu0 0.0
    %536 = vmatprep.subr.mxu0 0.0
    %537 = vmatpush1.msra.mxu0 0.0
    %538 = vmatprep.subr.mxu0 0.0
    %539 = vmatpush1.msra.mxu0 0.0
    %540 = vmatprep.subr.mxu0 0.0
    %541 = vmatpush1.msra.mxu0 0.0
    %542 = vmatprep.subr.mxu0 0.0
    %543 = vmatpush1.msra.mxu0 0.0
    %544 = vmatprep.subr.mxu0 0.0
    %545 = vmatpush1.msra.mxu0 0.0
    %546 = vmatprep.subr.mxu0 0.0
    %547 = vmatpush1.msra.mxu0 0.0
    %548 = vmatprep.subr.mxu0 0.0
    %549 = vmatpush1.msra.mxu0 0.0
    %550 = vmatprep.mubr.f32.mxu0 0.0
    %551 = vmatmul.mubr.f32.gmra.mrb[0].mxu0 %v478
    %v552 = vpop.f32.mrb[0].mxu0
    %v553 = vadd.f32 0.0, %v552
    %v554 = vpop.f32.mrb[0].mxu0
    %555 = vmatprep.mubr.f32.mxu0 0.0
    %556 = vmatmul.mubr.f32.gmra.mrb[0].mxu0 %v480
    %v557 = vpop.f32.mrb[0].mxu0
    %v558 = vadd.f32 0.0, %v557
    %v559 = vpop.f32.mrb[0].mxu0
    %560 = vmatprep.mubr.f32.mxu0 0.0
    %561 = vmatmul.mubr.f32.gmra.mrb[0].mxu0 %v482
    %v562 = vpop.f32.mrb[0].mxu0
    %v563 = vadd.f32 0.0, %v562
    %v564 = vpop.f32.mrb[0].mxu0
    %565 = vmatprep.mubr.f32.mxu0 0.0
    %566 = vmatmul.mubr.f32.gmra.mrb[0].mxu0 %v484
    %v567 = vpop.f32.mrb[0].mxu0
    %v568 = vadd.f32 0.0, %v567
    %v569 = vpop.f32.mrb[0].mxu0
    %570 = vdwg.mxu0
    %v579 = vcombine.low %v401, %v402
    %v580 = vcombine.low %v403, %v404
    %v581 = vcombine.low %v405, %v406
    %v582 = vcombine.low %v407, %v408
    %v583 = vsel %vm78, %v579, 0
    %v585 = vsel %vm78, %v580, 0
    %v587 = vsel %vm78, %v581, 0
    %v589 = vsel %vm78, %v582, 0
    %591 = vmatprep.subr.mxu0 0.0
    %592 = vmatpush1.msra.mxu0 %v409
    %593 = vmatprep.subr.mxu0 0.0
    %594 = vmatpush1.msra.mxu0 %v410
    %595 = vmatprep.subr.mxu0 0.0
    %596 = vmatpush1.msra.mxu0 0.0
    %597 = vmatprep.subr.mxu0 0.0
    %598 = vmatpush1.msra.mxu0 0.0
    %599 = vmatprep.subr.mxu0 0.0
    %600 = vmatpush1.msra.mxu0 0.0
    %601 = vmatprep.subr.mxu0 0.0
    %602 = vmatpush1.msra.mxu0 0.0
    %603 = vmatprep.subr.mxu0 0.0
    %604 = vmatpush1.msra.mxu0 0.0
    %605 = vmatprep.subr.mxu0 0.0
    %606 = vmatpush1.msra.mxu0 0.0
    %607 = vmatprep.subr.mxu0 0.0
    %608 = vmatpush1.msra.mxu0 0.0
    %609 = vmatprep.subr.mxu0 0.0
    %610 = vmatpush1.msra.mxu0 0.0
    %611 = vmatprep.subr.mxu0 0.0
    %612 = vmatpush1.msra.mxu0 0.0
    %613 = vmatprep.subr.mxu0 0.0
    %614 = vmatpush1.msra.mxu0 0.0
    %615 = vmatprep.subr.mxu0 0.0
    %616 = vmatpush1.msra.mxu0 0.0
    %617 = vmatprep.subr.mxu0 0.0
    %618 = vmatpush1.msra.mxu0 0.0
    %619 = vmatprep.subr.mxu0 0.0
    %620 = vmatpush1.msra.mxu0 0.0
    %621 = vmatprep.subr.mxu0 0.0
    %622 = vmatpush1.msra.mxu0 0.0
    %623 = vmatprep.subr.mxu0 0.0
    %624 = vmatpush1.msra.mxu0 0.0
    %625 = vmatprep.subr.mxu0 0.0
    %626 = vmatpush1.msra.mxu0 0.0
    %627 = vmatprep.subr.mxu0 0.0
    %628 = vmatpush1.msra.mxu0 0.0
    %629 = vmatprep.subr.mxu0 0.0
    %630 = vmatpush1.msra.mxu0 0.0
    %631 = vmatprep.subr.mxu0 0.0
    %632 = vmatpush1.msra.mxu0 0.0
    %633 = vmatprep.subr.mxu0 0.0
    %634 = vmatpush1.msra.mxu0 0.0
    %635 = vmatprep.subr.mxu0 0.0
    %636 = vmatpush1.msra.mxu0 0.0
    %637 = vmatprep.subr.mxu0 0.0
    %638 = vmatpush1.msra.mxu0 0.0
    %639 = vmatprep.subr.mxu0 0.0
    %640 = vmatpush1.msra.mxu0 0.0
    %641 = vmatprep.subr.mxu0 0.0
    %642 = vmatpush1.msra.mxu0 0.0
    %643 = vmatprep.subr.mxu0 0.0
    %644 = vmatpush1.msra.mxu0 0.0
    %645 = vmatprep.subr.mxu0 0.0
    %646 = vmatpush1.msra.mxu0 0.0
    %647 = vmatprep.subr.mxu0 0.0
    %648 = vmatpush1.msra.mxu0 0.0
    %649 = vmatprep.subr.mxu0 0.0
    %650 = vmatpush1.msra.mxu0 0.0
    %651 = vmatprep.subr.mxu0 0.0
    %652 = vmatpush1.msra.mxu0 0.0
    %653 = vmatprep.subr.mxu0 0.0
    %654 = vmatpush1.msra.mxu0 0.0
    %655 = vmatprep.mubr.f32.mxu0 0.0
    %656 = vmatmul.mubr.f32.gmra.mrb[0].mxu0 %v583
    %v657 = vpop.f32.mrb[0].mxu0
    %v658 = vadd.f32 %v553, %v657
    %v659 = vpop.f32.mrb[0].mxu0
    %660 = vmatprep.mubr.f32.mxu0 0.0
    %661 = vmatmul.mubr.f32.gmra.mrb[0].mxu0 %v585
    %v662 = vpop.f32.mrb[0].mxu0
    %v663 = vadd.f32 %v558, %v662
    %v664 = vpop.f32.mrb[0].mxu0
    %665 = vmatprep.mubr.f32.mxu0 0.0
    %666 = vmatmul.mubr.f32.gmra.mrb[0].mxu0 %v587
    %v667 = vpop.f32.mrb[0].mxu0
    %v668 = vadd.f32 %v563, %v667
    %v669 = vpop.f32.mrb[0].mxu0
    %670 = vmatprep.mubr.f32.mxu0 0.0
    %671 = vmatmul.mubr.f32.gmra.mrb[0].mxu0 %v589
    %v672 = vpop.f32.mrb[0].mxu0
    %v673 = vadd.f32 %v568, %v672
    %v674 = vpop.f32.mrb[0].mxu0
    %675 = vdwg.mxu0
    %vm676 = vcmask 261120
    %677 = vst.msk [vmem:[#allocation7] sm:$0xff] %vm676, %v658
    %678 = vst.msk [vmem:[#allocation7 + $0x8] sm:$0xff] %vm676, %v663
    %679 = vst.msk [vmem:[#allocation7 + $0x10] sm:$0xff] %vm676, %v668
    %680 = vst.msk [vmem:[#allocation7 + $0x18] sm:$0xff] %vm676, %v673
    // Predicated region
    $region26: #{tpu_custom_call.1} parent=1 // pred_check
      _
    $region27: #{tpu_custom_call.1} parent=1 // pred_check_branch
      %682 = sbr.rel (0) target = $region29
    $region28: #{tpu_custom_call.1} parent=1 // pred_region
      %s684 = ssub.s32 512, 512
      %685 = vsyncadd [#allocation4], %s684
      %s686 = sshll.u32 [#allocation7], 4
      %s687 = int_to_ptr.vmem [resolvable:$true] %s686
      %692 = dma.vmem_to_hbm [thread:$0]  %s687, 512, %s4, [#allocation4], 128, 128, 8
    $region29: #{tpu_custom_call.1} parent=1 // pred_fallthru
      _
    // Predicated region
    $region30: #{tpu_custom_call.1} parent=1 // pred_check
      _
    $region31: #{tpu_custom_call.1} parent=1 // pred_check_branch
      %694 = sbr.rel (0) target = $region33
    $region32: #{tpu_custom_call.1} parent=1 // pred_region
      %695 = dma.done [#allocation4], 512
    $region33: #{tpu_custom_call.1} parent=1 // pred_fallthru
      _
    %696 = vsyncpa [#allocation3], 1
    %697 = vsyncpa [#allocation6], 1
    %698 = vsyncpa [#allocation4], 1

</llo_original>
